<compile_context>
chip_gen: v5e
topology: v5e:2x2
jax: 0.10.0
libtpu: 0.0.40
codegen_flags: <defaults>
</compile_context>

<pallas_src>
import math
import functools

import jax
import jax.numpy as jnp
from jax.experimental import pallas as pl
from jax.experimental.pallas import tpu as pltpu  # noqa: F401  (kept for TPU backend)


# ----------------------------------------------------------------------------
# Shared math helpers (used by the kernel AND the pure-JAX reference)
# ----------------------------------------------------------------------------
def _layer_norm(x, gamma, beta, eps=1e-5):
    mu = jnp.mean(x, axis=-1, keepdims=True)
    var = jnp.mean((x - mu) ** 2, axis=-1, keepdims=True)
    return (x - mu) * jax.lax.rsqrt(var + eps) * gamma + beta


def sinusoidal_pos_embedding(T, F):
    # Matches the module exactly: exponent 2*j/F uses the RAW column index j
    # (sin for even j, cos for odd j).
    t = jnp.arange(T, dtype=jnp.float32)[:, None]                     # (T, 1)
    j = jnp.arange(F)
    denom = jnp.power(10000.0, 2.0 * j.astype(jnp.float32) / float(F))
    ang = t / denom[None, :]                                          # (T, F)
    return jnp.where((j % 2) == 0, jnp.sin(ang), jnp.cos(ang)).astype(jnp.float32)


# ----------------------------------------------------------------------------
# Fused encoder kernel (grid-less: the whole stack runs in one invocation)
# ----------------------------------------------------------------------------
def fused_transformer_kernel(
    # inputs
    x0_ref,                      # (BT, F)       pos-embedded input
    mask_ref,                    # (BT, BT)      additive block-diagonal bias (0 / -1e30)
    wqkv_ref, bqkv_ref,          # (L, F, 3F), (L, 1, 3F)   q-scale pre-folded
    wo_ref, bo_ref,              # (L, F, F),  (L, 1, F)
    w1_ref, b1_ref,              # (L, F, HID),(L, 1, HID)
    w2_ref, b2_ref,              # (L, HID, F),(L, 1, F)
    g1_ref, be1_ref, g2_ref, be2_ref,   # (L, 1, F) layer norms
    # outputs
    z_ref,                       # (BT, F)       final activations
    attn_ref,                    # (L, BT, BT)   head-averaged attention
    *, L, B, T, F, H,
):
    BT = B * T
    DH = F // H

    x = x0_ref[...]              # (BT, F) activation carry (traced value)
    mask = mask_ref[...]         # (BT, BT)

    for layer in range(L):       # unrolled at trace time (L is small & static)
        # ---- fused QKV projection: one MXU push ----
        qkv = jnp.dot(x, wqkv_ref[layer],
                      preferred_element_type=jnp.float32) + bqkv_ref[layer]  # (BT, 3F)

        attn_acc = None
        o_heads = []
        for h in range(H):
            q_h = qkv[:, h * DH:(h + 1) * DH]                 # (BT, DH) lane slice
            k_h = qkv[:, F + h * DH:F + (h + 1) * DH]
            v_h = qkv[:, 2 * F + h * DH:2 * F + (h + 1) * DH]

            # scores (q already carries 1/sqrt(DH)); mask kills cross-batch cols
            s = jax.lax.dot_general(q_h, k_h, (((1,), (1,)), ((), ())),
                                    preferred_element_type=jnp.float32)      # (BT, BT)
            s = s + mask
            s = s - jnp.max(s, axis=-1, keepdims=True)
            e = jnp.exp(s)
            inv = pl.reciprocal(jnp.sum(e, axis=-1, keepdims=True), approx=True)
            a = e * inv                                        # softmax rows

            attn_acc = a if attn_acc is None else attn_acc + a
            o_heads.append(jnp.dot(a, v_h, preferred_element_type=jnp.float32))

        # head-averaged attention weights (cross-batch entries are exactly 0)
        attn_ref[layer] = attn_acc * (1.0 / H)                 # (BT, BT)

        # ---- out-projection: one K=F contraction ----
        o = jnp.concatenate(o_heads, axis=-1)                  # (BT, F)
        sa = jnp.dot(o, wo_ref[layer],
                     preferred_element_type=jnp.float32) + bo_ref[layer]

        # ---- residual + norm1 (post-norm) ----
        h1 = _layer_norm(x + sa, g1_ref[layer], be1_ref[layer])

        # ---- feed forward (ReLU) ----
        ff = jnp.dot(h1, w1_ref[layer],
                     preferred_element_type=jnp.float32) + b1_ref[layer]
        ff = jnp.maximum(ff, 0.0)
        ff = jnp.dot(ff, w2_ref[layer],
                     preferred_element_type=jnp.float32) + b2_ref[layer]

        # ---- residual + norm2 ----
        x = _layer_norm(h1 + ff, g2_ref[layer], be2_ref[layer])

    z_ref[...] = x


# ----------------------------------------------------------------------------
# Wrapper
# ----------------------------------------------------------------------------
_WEIGHT_ORDER = ("wqkv", "bqkv", "wo", "bo", "w1", "b1", "w2", "b2",
                 "g1", "be1", "g2", "be2")


def base_transformer_forward(x_tbf, stacked, *, n_heads):
    """x_tbf: (T, B, F) like the PyTorch module.
    Returns (z: (T, B, F), att_weights: (L, B, T, T))."""
    T, B, F = x_tbf.shape
    H = n_heads
    L = stacked["wqkv"].shape[0]
    BT = B * T

    # positional embedding + layout change to (B*T, F): trivial XLA, no kernel
    p = sinusoidal_pos_embedding(T, F)                                # (T, F)
    x0 = (jnp.transpose(x_tbf, (1, 0, 2)) + p[None]).reshape(BT, F)

    # layer-invariant block-diagonal batch mask, built once, passed as input
    row_b = jnp.arange(BT, dtype=jnp.int32) // T
    mask = jnp.where(row_b[:, None] == row_b[None, :], 0.0, -1e30).astype(jnp.float32)

    weights = [stacked[k] for k in _WEIGHT_ORDER]
    kernel = functools.partial(fused_transformer_kernel, L=L, B=B, T=T, F=F, H=H)

    # Grid-less call: every operand / output is a whole-array VMEM block
    # (~100 KB total), the layer loop is unrolled inside the kernel.
    z_flat, attn_full = pl.pallas_call(
        kernel,
        out_shape=(
            jax.ShapeDtypeStruct((BT, F), jnp.float32),
            jax.ShapeDtypeStruct((L, BT, BT), jnp.float32),
        ),
    )(x0, mask, *weights)

    # wrapper-side layout plumbing back to the PyTorch conventions
    z = jnp.transpose(z_flat.reshape(B, T, F), (1, 0, 2))             # (T, B, F)
    attn_r = attn_full.reshape(L, B, T, B, T)
    att_weights = jnp.stack([attn_r[:, b, :, b, :] for b in range(B)], axis=1)
    return z, att_weights                                             # (L, B, T, T)


# ----------------------------------------------------------------------------
# Parameters (PyTorch layout -> kernel layout, all offline)
# ----------------------------------------------------------------------------
def init_layer_params(key, F, HID):
    ks = jax.random.split(key, 6)
    return {
        "in_proj_weight": jax.random.normal(ks[0], (3 * F, F), jnp.float32) * 0.05,
        "in_proj_bias":   jax.random.normal(ks[1], (3 * F,), jnp.float32) * 0.02,
        "out_proj_weight": jax.random.normal(ks[2], (F, F), jnp.float32) * 0.05,
        "out_proj_bias":   jax.random.normal(ks[3], (F,), jnp.float32) * 0.02,
        "linear1_weight": jax.random.normal(ks[4], (HID, F), jnp.float32) * 0.05,
        "linear1_bias":   jnp.zeros((HID,), jnp.float32),
        "linear2_weight": jax.random.normal(ks[5], (F, HID), jnp.float32) * 0.05,
        "linear2_bias":   jnp.zeros((F,), jnp.float32),
        "norm1_weight": jnp.ones((F,), jnp.float32),
        "norm1_bias":   jnp.zeros((F,), jnp.float32),
        "norm2_weight": jnp.ones((F,), jnp.float32),
        "norm2_bias":   jnp.zeros((F,), jnp.float32),
    }


def prepare_params(layer_params, F, H, HID):
    """Fuse q/k/v weights+biases, fold the 1/sqrt(DH) q-scale offline, and
    stack all layers along a leading dim."""
    DH = F // H
    scale = 1.0 / math.sqrt(DH)
    # scale only the q third of the fused projection (weight AND bias)
    qscale = jnp.concatenate([jnp.full((F,), scale, jnp.float32),
                              jnp.ones((2 * F,), jnp.float32)])

    def per_layer(p):
        wqkv = p["in_proj_weight"].T * qscale[None, :]          # (F, 3F)
        bqkv = p["in_proj_bias"].reshape(1, 3 * F) * qscale[None, :]
        return dict(
            wqkv=wqkv, bqkv=bqkv,
            wo=p["out_proj_weight"].T,                          # (F, F)
            bo=p["out_proj_bias"].reshape(1, F),
            w1=p["linear1_weight"].T, b1=p["linear1_bias"].reshape(1, HID),
            w2=p["linear2_weight"].T, b2=p["linear2_bias"].reshape(1, F),
            g1=p["norm1_weight"].reshape(1, F), be1=p["norm1_bias"].reshape(1, F),
            g2=p["norm2_weight"].reshape(1, F), be2=p["norm2_bias"].reshape(1, F),
        )

    per = [per_layer(p) for p in layer_params]
    return {k: jnp.stack([pp[k] for pp in per], axis=0) for k in _WEIGHT_ORDER}


# ----------------------------------------------------------------------------
# Pure-JAX reference (same math, standard per-batch attention, no Pallas)
# ----------------------------------------------------------------------------
def reference_forward(x_tbf, stacked, *, n_heads):
    T, B, F = x_tbf.shape
    H = n_heads
    DH = F // H
    L = stacked["wqkv"].shape[0]

    p = sinusoidal_pos_embedding(T, F)
    z = jnp.transpose(x_tbf + p[:, None, :], (1, 0, 2))              # (B, T, F)
    atts = []
    for l in range(L):
        qkv = z @ stacked["wqkv"][l] + stacked["bqkv"][l]            # (B, T, 3F)
        q, k, v = qkv[..., :F], qkv[..., F:2 * F], qkv[..., 2 * F:]
        q = q.reshape(B, T, H, DH).transpose(0, 2, 1, 3)             # (B, H, T, DH)
        k = k.reshape(B, T, H, DH).transpose(0, 2, 1, 3)
        v = v.reshape(B, T, H, DH).transpose(0, 2, 1, 3)
        s = jnp.einsum('bhid,bhjd->bhij', q, k)                      # scale pre-folded
        a = jax.nn.softmax(s, axis=-1)
        atts.append(jnp.mean(a, axis=1))                             # (B, T, T)
        o = jnp.einsum('bhij,bhjd->bhid', a, v)
        o = o.transpose(0, 2, 1, 3).reshape(B, T, F)
        sa = o @ stacked["wo"][l] + stacked["bo"][l]
        h1 = _layer_norm(z + sa, stacked["g1"][l], stacked["be1"][l])
        ff = jnp.maximum(h1 @ stacked["w1"][l] + stacked["b1"][l], 0.0)
        ff = ff @ stacked["w2"][l] + stacked["b2"][l]
        z = _layer_norm(h1 + ff, stacked["g2"][l], stacked["be2"][l])
    return jnp.transpose(z, (1, 0, 2)), jnp.stack(atts, axis=0)      # (T,B,F), (L,B,T,T)


# ----------------------------------------------------------------------------
# Main
# ----------------------------------------------------------------------------
if __name__ == "__main__":
    # Hyperparameters: n_heads=4, dropout=0.1 (identity), n_layers=2,
    # input_dim(F)=32, hidden_dim=64.  Small shapes: T=8, B=2.
    n_heads, n_layers, F, HID = 4, 2, 32, 64
    T, B = 8, 2

    key = jax.random.PRNGKey(0)
    key, xkey = jax.random.split(key)
    x = jax.random.normal(xkey, (T, B, F), jnp.float32)               # (T, B, F)

    layer_keys = jax.random.split(key, n_layers)
    layer_params = [init_layer_params(layer_keys[l], F, HID) for l in range(n_layers)]
    stacked = prepare_params(layer_params, F, n_heads, HID)

    fwd = jax.jit(functools.partial(base_transformer_forward, n_heads=n_heads))
    z, att_weights = fwd(x, stacked)
    z, att_weights = jax.block_until_ready((z, att_weights))

    # shape / sanity checks
    assert z.shape == (T, B, F), z.shape
    assert att_weights.shape == (n_layers, B, T, T), att_weights.shape
    # softmax rows must sum to ~1 (approx reciprocal => small tolerance)
    assert jnp.allclose(att_weights.sum(-1), 1.0, atol=5e-3)
    assert bool(jnp.all(jnp.isfinite(z)))
    assert bool(jnp.all(jnp.isfinite(att_weights)))

    # numerical check against the pure-JAX reference (tolerances allow for
    # default MXU precision + approx reciprocal; real bugs would be O(1))
    z_ref, att_ref = reference_forward(x, stacked, n_heads=n_heads)
    assert jnp.allclose(att_weights, att_ref, atol=1e-2), \
        float(jnp.max(jnp.abs(att_weights - att_ref)))
    assert jnp.allclose(z, z_ref, atol=5e-2), \
        float(jnp.max(jnp.abs(z - z_ref)))

    print("KERNEL_OK")
</pallas_src>

<mosaic_0001>
module attributes {stable_mosaic.version = 11 : i64} {
  func.func @fused_transformer_kernel(%arg0: memref<16x32xf32, #tpu.memory_space<vmem>>, %arg1: memref<16x16xf32, #tpu.memory_space<vmem>>, %arg2: memref<2x32x96xf32, #tpu.memory_space<vmem>>, %arg3: memref<2x1x96xf32, #tpu.memory_space<vmem>>, %arg4: memref<2x32x32xf32, #tpu.memory_space<vmem>>, %arg5: memref<2x1x32xf32, #tpu.memory_space<vmem>>, %arg6: memref<2x32x64xf32, #tpu.memory_space<vmem>>, %arg7: memref<2x1x64xf32, #tpu.memory_space<vmem>>, %arg8: memref<2x64x32xf32, #tpu.memory_space<vmem>>, %arg9: memref<2x1x32xf32, #tpu.memory_space<vmem>>, %arg10: memref<2x1x32xf32, #tpu.memory_space<vmem>>, %arg11: memref<2x1x32xf32, #tpu.memory_space<vmem>>, %arg12: memref<2x1x32xf32, #tpu.memory_space<vmem>>, %arg13: memref<2x1x32xf32, #tpu.memory_space<vmem>>, %arg14: memref<16x32xf32, #tpu.memory_space<vmem>>, %arg15: memref<2x16x16xf32, #tpu.memory_space<vmem>>) attributes {dimension_semantics = [], scalar_prefetch = 0 : i64, scratch_operands = 0 : i64, tpu.core_type = #tpu.core_type<tc>} {
    %c0 = arith.constant 0 : index
    %c0_0 = arith.constant 0 : index
    %0 = vector.load %arg0[%c0, %c0_0] : memref<16x32xf32, #tpu.memory_space<vmem>>, vector<16x32xf32>
    %c0_1 = arith.constant 0 : index
    %c0_2 = arith.constant 0 : index
    %1 = vector.load %arg1[%c0_1, %c0_2] : memref<16x16xf32, #tpu.memory_space<vmem>>, vector<16x16xf32>
    %c0_3 = arith.constant 0 : index
    %c0_4 = arith.constant 0 : index
    %c0_5 = arith.constant 0 : index
    %2 = vector.load %arg2[%c0_3, %c0_4, %c0_5] : memref<2x32x96xf32, #tpu.memory_space<vmem>>, vector<1x32x96xf32>
    %3 = vector.shape_cast %2 : vector<1x32x96xf32> to vector<32x96xf32>
    %cst = arith.constant dense<0.000000e+00> : vector<16x96xf32>
    %4 = tpu.matmul %0, %3, %cst {dimension_numbers = #tpu.dot_dimension_numbers<[1], [0], [0], [1], [0, 0, 1, 1], [], []>} : vector<16x32xf32>, vector<32x96xf32>, vector<16x96xf32> -> vector<16x96xf32>
    %c0_6 = arith.constant 0 : index
    %c0_7 = arith.constant 0 : index
    %c0_8 = arith.constant 0 : index
    %5 = vector.load %arg3[%c0_6, %c0_7, %c0_8] : memref<2x1x96xf32, #tpu.memory_space<vmem>>, vector<1x1x96xf32>
    %6 = vector.shape_cast %5 : vector<1x1x96xf32> to vector<1x96xf32>
    %7 = vector.broadcast %6 : vector<1x96xf32> to vector<16x96xf32>
    %8 = arith.addf %4, %7 : vector<16x96xf32>
    %9 = vector.extract_strided_slice %8 {offsets = [0, 0], sizes = [16, 8], strides = [1, 1]} : vector<16x96xf32> to vector<16x8xf32>
    %10 = vector.extract_strided_slice %8 {offsets = [0, 32], sizes = [16, 8], strides = [1, 1]} : vector<16x96xf32> to vector<16x8xf32>
    %11 = vector.extract_strided_slice %8 {offsets = [0, 64], sizes = [16, 8], strides = [1, 1]} : vector<16x96xf32> to vector<16x8xf32>
    %cst_9 = arith.constant dense<0.000000e+00> : vector<16x16xf32>
    %12 = tpu.matmul %9, %10, %cst_9 {dimension_numbers = #tpu.dot_dimension_numbers<[1], [1], [0], [0], [0, 0, 1, 0], [], []>} : vector<16x8xf32>, vector<16x8xf32>, vector<16x16xf32> -> vector<16x16xf32>
    %13 = arith.addf %12, %1 : vector<16x16xf32>
    %cst_10 = arith.constant dense<0xFF800000> : vector<16xf32>
    %14 = vector.multi_reduction <maximumf>, %13, %cst_10 [1] : vector<16x16xf32> to vector<16xf32>
    %15 = vector.shape_cast %14 : vector<16xf32> to vector<16x1xf32>
    %16 = vector.broadcast %15 : vector<16x1xf32> to vector<16x16xf32>
    %17 = arith.subf %13, %16 : vector<16x16xf32>
    %18 = math.exp %17 : vector<16x16xf32>
    %cst_11 = arith.constant dense<0.000000e+00> : vector<16xf32>
    %19 = vector.multi_reduction <add>, %18, %cst_11 [1] : vector<16x16xf32> to vector<16xf32>
    %20 = vector.shape_cast %19 : vector<16xf32> to vector<16x1xf32>
    %21 = tpu.reciprocal %20 {approx = true} : vector<16x1xf32> -> vector<16x1xf32>
    %22 = vector.broadcast %21 : vector<16x1xf32> to vector<16x16xf32>
    %23 = arith.mulf %18, %22 : vector<16x16xf32>
    %cst_12 = arith.constant dense<0.000000e+00> : vector<16x8xf32>
    %24 = tpu.matmul %23, %11, %cst_12 {dimension_numbers = #tpu.dot_dimension_numbers<[1], [0], [0], [1], [0, 0, 1, 1], [], []>} : vector<16x16xf32>, vector<16x8xf32>, vector<16x8xf32> -> vector<16x8xf32>
    %25 = vector.extract_strided_slice %8 {offsets = [0, 8], sizes = [16, 8], strides = [1, 1]} : vector<16x96xf32> to vector<16x8xf32>
    %26 = vector.extract_strided_slice %8 {offsets = [0, 40], sizes = [16, 8], strides = [1, 1]} : vector<16x96xf32> to vector<16x8xf32>
    %27 = vector.extract_strided_slice %8 {offsets = [0, 72], sizes = [16, 8], strides = [1, 1]} : vector<16x96xf32> to vector<16x8xf32>
    %cst_13 = arith.constant dense<0.000000e+00> : vector<16x16xf32>
    %28 = tpu.matmul %25, %26, %cst_13 {dimension_numbers = #tpu.dot_dimension_numbers<[1], [1], [0], [0], [0, 0, 1, 0], [], []>} : vector<16x8xf32>, vector<16x8xf32>, vector<16x16xf32> -> vector<16x16xf32>
    %29 = arith.addf %28, %1 : vector<16x16xf32>
    %cst_14 = arith.constant dense<0xFF800000> : vector<16xf32>
    %30 = vector.multi_reduction <maximumf>, %29, %cst_14 [1] : vector<16x16xf32> to vector<16xf32>
    %31 = vector.shape_cast %30 : vector<16xf32> to vector<16x1xf32>
    %32 = vector.broadcast %31 : vector<16x1xf32> to vector<16x16xf32>
    %33 = arith.subf %29, %32 : vector<16x16xf32>
    %34 = math.exp %33 : vector<16x16xf32>
    %cst_15 = arith.constant dense<0.000000e+00> : vector<16xf32>
    %35 = vector.multi_reduction <add>, %34, %cst_15 [1] : vector<16x16xf32> to vector<16xf32>
    %36 = vector.shape_cast %35 : vector<16xf32> to vector<16x1xf32>
    %37 = tpu.reciprocal %36 {approx = true} : vector<16x1xf32> -> vector<16x1xf32>
    %38 = vector.broadcast %37 : vector<16x1xf32> to vector<16x16xf32>
    %39 = arith.mulf %34, %38 : vector<16x16xf32>
    %40 = arith.addf %23, %39 : vector<16x16xf32>
    %cst_16 = arith.constant dense<0.000000e+00> : vector<16x8xf32>
    %41 = tpu.matmul %39, %27, %cst_16 {dimension_numbers = #tpu.dot_dimension_numbers<[1], [0], [0], [1], [0, 0, 1, 1], [], []>} : vector<16x16xf32>, vector<16x8xf32>, vector<16x8xf32> -> vector<16x8xf32>
    %42 = vector.extract_strided_slice %8 {offsets = [0, 16], sizes = [16, 8], strides = [1, 1]} : vector<16x96xf32> to vector<16x8xf32>
    %43 = vector.extract_strided_slice %8 {offsets = [0, 48], sizes = [16, 8], strides = [1, 1]} : vector<16x96xf32> to vector<16x8xf32>
    %44 = vector.extract_strided_slice %8 {offsets = [0, 80], sizes = [16, 8], strides = [1, 1]} : vector<16x96xf32> to vector<16x8xf32>
    %cst_17 = arith.constant dense<0.000000e+00> : vector<16x16xf32>
    %45 = tpu.matmul %42, %43, %cst_17 {dimension_numbers = #tpu.dot_dimension_numbers<[1], [1], [0], [0], [0, 0, 1, 0], [], []>} : vector<16x8xf32>, vector<16x8xf32>, vector<16x16xf32> -> vector<16x16xf32>
    %46 = arith.addf %45, %1 : vector<16x16xf32>
    %cst_18 = arith.constant dense<0xFF800000> : vector<16xf32>
    %47 = vector.multi_reduction <maximumf>, %46, %cst_18 [1] : vector<16x16xf32> to vector<16xf32>
    %48 = vector.shape_cast %47 : vector<16xf32> to vector<16x1xf32>
    %49 = vector.broadcast %48 : vector<16x1xf32> to vector<16x16xf32>
    %50 = arith.subf %46, %49 : vector<16x16xf32>
    %51 = math.exp %50 : vector<16x16xf32>
    %cst_19 = arith.constant dense<0.000000e+00> : vector<16xf32>
    %52 = vector.multi_reduction <add>, %51, %cst_19 [1] : vector<16x16xf32> to vector<16xf32>
    %53 = vector.shape_cast %52 : vector<16xf32> to vector<16x1xf32>
    %54 = tpu.reciprocal %53 {approx = true} : vector<16x1xf32> -> vector<16x1xf32>
    %55 = vector.broadcast %54 : vector<16x1xf32> to vector<16x16xf32>
    %56 = arith.mulf %51, %55 : vector<16x16xf32>
    %57 = arith.addf %40, %56 : vector<16x16xf32>
    %cst_20 = arith.constant dense<0.000000e+00> : vector<16x8xf32>
    %58 = tpu.matmul %56, %44, %cst_20 {dimension_numbers = #tpu.dot_dimension_numbers<[1], [0], [0], [1], [0, 0, 1, 1], [], []>} : vector<16x16xf32>, vector<16x8xf32>, vector<16x8xf32> -> vector<16x8xf32>
    %59 = vector.extract_strided_slice %8 {offsets = [0, 24], sizes = [16, 8], strides = [1, 1]} : vector<16x96xf32> to vector<16x8xf32>
    %60 = vector.extract_strided_slice %8 {offsets = [0, 56], sizes = [16, 8], strides = [1, 1]} : vector<16x96xf32> to vector<16x8xf32>
    %61 = vector.extract_strided_slice %8 {offsets = [0, 88], sizes = [16, 8], strides = [1, 1]} : vector<16x96xf32> to vector<16x8xf32>
    %cst_21 = arith.constant dense<0.000000e+00> : vector<16x16xf32>
    %62 = tpu.matmul %59, %60, %cst_21 {dimension_numbers = #tpu.dot_dimension_numbers<[1], [1], [0], [0], [0, 0, 1, 0], [], []>} : vector<16x8xf32>, vector<16x8xf32>, vector<16x16xf32> -> vector<16x16xf32>
    %63 = arith.addf %62, %1 : vector<16x16xf32>
    %cst_22 = arith.constant dense<0xFF800000> : vector<16xf32>
    %64 = vector.multi_reduction <maximumf>, %63, %cst_22 [1] : vector<16x16xf32> to vector<16xf32>
    %65 = vector.shape_cast %64 : vector<16xf32> to vector<16x1xf32>
    %66 = vector.broadcast %65 : vector<16x1xf32> to vector<16x16xf32>
    %67 = arith.subf %63, %66 : vector<16x16xf32>
    %68 = math.exp %67 : vector<16x16xf32>
    %cst_23 = arith.constant dense<0.000000e+00> : vector<16xf32>
    %69 = vector.multi_reduction <add>, %68, %cst_23 [1] : vector<16x16xf32> to vector<16xf32>
    %70 = vector.shape_cast %69 : vector<16xf32> to vector<16x1xf32>
    %71 = tpu.reciprocal %70 {approx = true} : vector<16x1xf32> -> vector<16x1xf32>
    %72 = vector.broadcast %71 : vector<16x1xf32> to vector<16x16xf32>
    %73 = arith.mulf %68, %72 : vector<16x16xf32>
    %74 = arith.addf %57, %73 : vector<16x16xf32>
    %cst_24 = arith.constant dense<0.000000e+00> : vector<16x8xf32>
    %75 = tpu.matmul %73, %61, %cst_24 {dimension_numbers = #tpu.dot_dimension_numbers<[1], [0], [0], [1], [0, 0, 1, 1], [], []>} : vector<16x16xf32>, vector<16x8xf32>, vector<16x8xf32> -> vector<16x8xf32>
    %cst_25 = arith.constant 2.500000e-01 : f32
    %76 = vector.broadcast %cst_25 : f32 to vector<16x16xf32>
    %77 = arith.mulf %74, %76 : vector<16x16xf32>
    %c0_26 = arith.constant 0 : index
    %c0_27 = arith.constant 0 : index
    %c0_28 = arith.constant 0 : index
    %78 = vector.load %arg15[%c0_26, %c0_27, %c0_28] : memref<2x16x16xf32, #tpu.memory_space<vmem>>, vector<1x16x16xf32>
    %79 = vector.shape_cast %78 : vector<1x16x16xf32> to vector<16x16xf32>
    %80 = vector.shape_cast %77 : vector<16x16xf32> to vector<1x16x16xf32>
    tpu.vector_store %arg15[%c0_26, %c0_27, %c0_28], %80 {strides = array<i32>} : memref<2x16x16xf32, #tpu.memory_space<vmem>>, vector<1x16x16xf32>,
    %81 = tpu.concatenate %24, %41, %58, %75 in 1 : vector<16x8xf32>, vector<16x8xf32>, vector<16x8xf32>, vector<16x8xf32> -> vector<16x32xf32>
    %c0_29 = arith.constant 0 : index
    %c0_30 = arith.constant 0 : index
    %c0_31 = arith.constant 0 : index
    %82 = vector.load %arg4[%c0_29, %c0_30, %c0_31] : memref<2x32x32xf32, #tpu.memory_space<vmem>>, vector<1x32x32xf32>
    %83 = vector.shape_cast %82 : vector<1x32x32xf32> to vector<32x32xf32>
    %cst_32 = arith.constant dense<0.000000e+00> : vector<16x32xf32>
    %84 = tpu.matmul %81, %83, %cst_32 {dimension_numbers = #tpu.dot_dimension_numbers<[1], [0], [0], [1], [0, 0, 1, 1], [], []>} : vector<16x32xf32>, vector<32x32xf32>, vector<16x32xf32> -> vector<16x32xf32>
    %c0_33 = arith.constant 0 : index
    %c0_34 = arith.constant 0 : index
    %c0_35 = arith.constant 0 : index
    %85 = vector.load %arg5[%c0_33, %c0_34, %c0_35] : memref<2x1x32xf32, #tpu.memory_space<vmem>>, vector<1x1x32xf32>
    %86 = vector.shape_cast %85 : vector<1x1x32xf32> to vector<1x32xf32>
    %87 = vector.broadcast %86 : vector<1x32xf32> to vector<16x32xf32>
    %88 = arith.addf %84, %87 : vector<16x32xf32>
    %89 = arith.addf %0, %88 : vector<16x32xf32>
    %c0_36 = arith.constant 0 : index
    %c0_37 = arith.constant 0 : index
    %c0_38 = arith.constant 0 : index
    %90 = vector.load %arg10[%c0_36, %c0_37, %c0_38] : memref<2x1x32xf32, #tpu.memory_space<vmem>>, vector<1x1x32xf32>
    %91 = vector.shape_cast %90 : vector<1x1x32xf32> to vector<1x32xf32>
    %c0_39 = arith.constant 0 : index
    %c0_40 = arith.constant 0 : index
    %c0_41 = arith.constant 0 : index
    %92 = vector.load %arg11[%c0_39, %c0_40, %c0_41] : memref<2x1x32xf32, #tpu.memory_space<vmem>>, vector<1x1x32xf32>
    %93 = vector.shape_cast %92 : vector<1x1x32xf32> to vector<1x32xf32>
    %cst_42 = arith.constant dense<0.000000e+00> : vector<16xf32>
    %94 = vector.multi_reduction <add>, %89, %cst_42 [1] : vector<16x32xf32> to vector<16xf32>
    %95 = vector.shape_cast %94 : vector<16xf32> to vector<16x1xf32>
    %cst_43 = arith.constant 3.200000e+01 : f32
    %96 = vector.broadcast %cst_43 : f32 to vector<16x1xf32>
    %97 = arith.divf %95, %96 : vector<16x1xf32>
    %98 = vector.broadcast %97 : vector<16x1xf32> to vector<16x32xf32>
    %99 = arith.subf %89, %98 : vector<16x32xf32>
    %100 = arith.mulf %99, %99 : vector<16x32xf32>
    %cst_44 = arith.constant dense<0.000000e+00> : vector<16xf32>
    %101 = vector.multi_reduction <add>, %100, %cst_44 [1] : vector<16x32xf32> to vector<16xf32>
    %102 = vector.shape_cast %101 : vector<16xf32> to vector<16x1xf32>
    %cst_45 = arith.constant 3.200000e+01 : f32
    %103 = vector.broadcast %cst_45 : f32 to vector<16x1xf32>
    %104 = arith.divf %102, %103 : vector<16x1xf32>
    %105 = vector.broadcast %97 : vector<16x1xf32> to vector<16x32xf32>
    %106 = arith.subf %89, %105 : vector<16x32xf32>
    %cst_46 = arith.constant 9.99999974E-6 : f32
    %107 = vector.broadcast %cst_46 : f32 to vector<16x1xf32>
    %108 = arith.addf %104, %107 : vector<16x1xf32>
    %109 = math.rsqrt %108 : vector<16x1xf32>
    %110 = vector.broadcast %109 : vector<16x1xf32> to vector<16x32xf32>
    %111 = arith.mulf %106, %110 : vector<16x32xf32>
    %112 = vector.broadcast %91 : vector<1x32xf32> to vector<16x32xf32>
    %113 = arith.mulf %111, %112 : vector<16x32xf32>
    %114 = vector.broadcast %93 : vector<1x32xf32> to vector<16x32xf32>
    %115 = arith.addf %113, %114 : vector<16x32xf32>
    %c0_47 = arith.constant 0 : index
    %c0_48 = arith.constant 0 : index
    %c0_49 = arith.constant 0 : index
    %116 = vector.load %arg6[%c0_47, %c0_48, %c0_49] : memref<2x32x64xf32, #tpu.memory_space<vmem>>, vector<1x32x64xf32>
    %117 = vector.shape_cast %116 : vector<1x32x64xf32> to vector<32x64xf32>
    %cst_50 = arith.constant dense<0.000000e+00> : vector<16x64xf32>
    %118 = tpu.matmul %115, %117, %cst_50 {dimension_numbers = #tpu.dot_dimension_numbers<[1], [0], [0], [1], [0, 0, 1, 1], [], []>} : vector<16x32xf32>, vector<32x64xf32>, vector<16x64xf32> -> vector<16x64xf32>
    %c0_51 = arith.constant 0 : index
    %c0_52 = arith.constant 0 : index
    %c0_53 = arith.constant 0 : index
    %119 = vector.load %arg7[%c0_51, %c0_52, %c0_53] : memref<2x1x64xf32, #tpu.memory_space<vmem>>, vector<1x1x64xf32>
    %120 = vector.shape_cast %119 : vector<1x1x64xf32> to vector<1x64xf32>
    %121 = vector.broadcast %120 : vector<1x64xf32> to vector<16x64xf32>
    %122 = arith.addf %118, %121 : vector<16x64xf32>
    %cst_54 = arith.constant 0.000000e+00 : f32
    %123 = vector.broadcast %cst_54 : f32 to vector<16x64xf32>
    %124 = arith.maximumf %122, %123 : vector<16x64xf32>
    %c0_55 = arith.constant 0 : index
    %c0_56 = arith.constant 0 : index
    %c0_57 = arith.constant 0 : index
    %125 = vector.load %arg8[%c0_55, %c0_56, %c0_57] : memref<2x64x32xf32, #tpu.memory_space<vmem>>, vector<1x64x32xf32>
    %126 = vector.shape_cast %125 : vector<1x64x32xf32> to vector<64x32xf32>
    %cst_58 = arith.constant dense<0.000000e+00> : vector<16x32xf32>
    %127 = tpu.matmul %124, %126, %cst_58 {dimension_numbers = #tpu.dot_dimension_numbers<[1], [0], [0], [1], [0, 0, 1, 1], [], []>} : vector<16x64xf32>, vector<64x32xf32>, vector<16x32xf32> -> vector<16x32xf32>
    %c0_59 = arith.constant 0 : index
    %c0_60 = arith.constant 0 : index
    %c0_61 = arith.constant 0 : index
    %128 = vector.load %arg9[%c0_59, %c0_60, %c0_61] : memref<2x1x32xf32, #tpu.memory_space<vmem>>, vector<1x1x32xf32>
    %129 = vector.shape_cast %128 : vector<1x1x32xf32> to vector<1x32xf32>
    %130 = vector.broadcast %129 : vector<1x32xf32> to vector<16x32xf32>
    %131 = arith.addf %127, %130 : vector<16x32xf32>
    %132 = arith.addf %115, %131 : vector<16x32xf32>
    %c0_62 = arith.constant 0 : index
    %c0_63 = arith.constant 0 : index
    %c0_64 = arith.constant 0 : index
    %133 = vector.load %arg12[%c0_62, %c0_63, %c0_64] : memref<2x1x32xf32, #tpu.memory_space<vmem>>, vector<1x1x32xf32>
    %134 = vector.shape_cast %133 : vector<1x1x32xf32> to vector<1x32xf32>
    %c0_65 = arith.constant 0 : index
    %c0_66 = arith.constant 0 : index
    %c0_67 = arith.constant 0 : index
    %135 = vector.load %arg13[%c0_65, %c0_66, %c0_67] : memref<2x1x32xf32, #tpu.memory_space<vmem>>, vector<1x1x32xf32>
    %136 = vector.shape_cast %135 : vector<1x1x32xf32> to vector<1x32xf32>
    %cst_68 = arith.constant dense<0.000000e+00> : vector<16xf32>
    %137 = vector.multi_reduction <add>, %132, %cst_68 [1] : vector<16x32xf32> to vector<16xf32>
    %138 = vector.shape_cast %137 : vector<16xf32> to vector<16x1xf32>
    %cst_69 = arith.constant 3.200000e+01 : f32
    %139 = vector.broadcast %cst_69 : f32 to vector<16x1xf32>
    %140 = arith.divf %138, %139 : vector<16x1xf32>
    %141 = vector.broadcast %140 : vector<16x1xf32> to vector<16x32xf32>
    %142 = arith.subf %132, %141 : vector<16x32xf32>
    %143 = arith.mulf %142, %142 : vector<16x32xf32>
    %cst_70 = arith.constant dense<0.000000e+00> : vector<16xf32>
    %144 = vector.multi_reduction <add>, %143, %cst_70 [1] : vector<16x32xf32> to vector<16xf32>
    %145 = vector.shape_cast %144 : vector<16xf32> to vector<16x1xf32>
    %cst_71 = arith.constant 3.200000e+01 : f32
    %146 = vector.broadcast %cst_71 : f32 to vector<16x1xf32>
    %147 = arith.divf %145, %146 : vector<16x1xf32>
    %148 = vector.broadcast %140 : vector<16x1xf32> to vector<16x32xf32>
    %149 = arith.subf %132, %148 : vector<16x32xf32>
    %cst_72 = arith.constant 9.99999974E-6 : f32
    %150 = vector.broadcast %cst_72 : f32 to vector<16x1xf32>
    %151 = arith.addf %147, %150 : vector<16x1xf32>
    %152 = math.rsqrt %151 : vector<16x1xf32>
    %153 = vector.broadcast %152 : vector<16x1xf32> to vector<16x32xf32>
    %154 = arith.mulf %149, %153 : vector<16x32xf32>
    %155 = vector.broadcast %134 : vector<1x32xf32> to vector<16x32xf32>
    %156 = arith.mulf %154, %155 : vector<16x32xf32>
    %157 = vector.broadcast %136 : vector<1x32xf32> to vector<16x32xf32>
    %158 = arith.addf %156, %157 : vector<16x32xf32>
    %c1 = arith.constant 1 : index
    %c0_73 = arith.constant 0 : index
    %c0_74 = arith.constant 0 : index
    %159 = vector.load %arg2[%c1, %c0_73, %c0_74] : memref<2x32x96xf32, #tpu.memory_space<vmem>>, vector<1x32x96xf32>
    %160 = vector.shape_cast %159 : vector<1x32x96xf32> to vector<32x96xf32>
    %cst_75 = arith.constant dense<0.000000e+00> : vector<16x96xf32>
    %161 = tpu.matmul %158, %160, %cst_75 {dimension_numbers = #tpu.dot_dimension_numbers<[1], [0], [0], [1], [0, 0, 1, 1], [], []>} : vector<16x32xf32>, vector<32x96xf32>, vector<16x96xf32> -> vector<16x96xf32>
    %c1_76 = arith.constant 1 : index
    %c0_77 = arith.constant 0 : index
    %c0_78 = arith.constant 0 : index
    %162 = vector.load %arg3[%c1_76, %c0_77, %c0_78] : memref<2x1x96xf32, #tpu.memory_space<vmem>>, vector<1x1x96xf32>
    %163 = vector.shape_cast %162 : vector<1x1x96xf32> to vector<1x96xf32>
    %164 = vector.broadcast %163 : vector<1x96xf32> to vector<16x96xf32>
    %165 = arith.addf %161, %164 : vector<16x96xf32>
    %166 = vector.extract_strided_slice %165 {offsets = [0, 0], sizes = [16, 8], strides = [1, 1]} : vector<16x96xf32> to vector<16x8xf32>
    %167 = vector.extract_strided_slice %165 {offsets = [0, 32], sizes = [16, 8], strides = [1, 1]} : vector<16x96xf32> to vector<16x8xf32>
    %168 = vector.extract_strided_slice %165 {offsets = [0, 64], sizes = [16, 8], strides = [1, 1]} : vector<16x96xf32> to vector<16x8xf32>
    %cst_79 = arith.constant dense<0.000000e+00> : vector<16x16xf32>
    %169 = tpu.matmul %166, %167, %cst_79 {dimension_numbers = #tpu.dot_dimension_numbers<[1], [1], [0], [0], [0, 0, 1, 0], [], []>} : vector<16x8xf32>, vector<16x8xf32>, vector<16x16xf32> -> vector<16x16xf32>
    %170 = arith.addf %169, %1 : vector<16x16xf32>
    %cst_80 = arith.constant dense<0xFF800000> : vector<16xf32>
    %171 = vector.multi_reduction <maximumf>, %170, %cst_80 [1] : vector<16x16xf32> to vector<16xf32>
    %172 = vector.shape_cast %171 : vector<16xf32> to vector<16x1xf32>
    %173 = vector.broadcast %172 : vector<16x1xf32> to vector<16x16xf32>
    %174 = arith.subf %170, %173 : vector<16x16xf32>
    %175 = math.exp %174 : vector<16x16xf32>
    %cst_81 = arith.constant dense<0.000000e+00> : vector<16xf32>
    %176 = vector.multi_reduction <add>, %175, %cst_81 [1] : vector<16x16xf32> to vector<16xf32>
    %177 = vector.shape_cast %176 : vector<16xf32> to vector<16x1xf32>
    %178 = tpu.reciprocal %177 {approx = true} : vector<16x1xf32> -> vector<16x1xf32>
    %179 = vector.broadcast %178 : vector<16x1xf32> to vector<16x16xf32>
    %180 = arith.mulf %175, %179 : vector<16x16xf32>
    %cst_82 = arith.constant dense<0.000000e+00> : vector<16x8xf32>
    %181 = tpu.matmul %180, %168, %cst_82 {dimension_numbers = #tpu.dot_dimension_numbers<[1], [0], [0], [1], [0, 0, 1, 1], [], []>} : vector<16x16xf32>, vector<16x8xf32>, vector<16x8xf32> -> vector<16x8xf32>
    %182 = vector.extract_strided_slice %165 {offsets = [0, 8], sizes = [16, 8], strides = [1, 1]} : vector<16x96xf32> to vector<16x8xf32>
    %183 = vector.extract_strided_slice %165 {offsets = [0, 40], sizes = [16, 8], strides = [1, 1]} : vector<16x96xf32> to vector<16x8xf32>
    %184 = vector.extract_strided_slice %165 {offsets = [0, 72], sizes = [16, 8], strides = [1, 1]} : vector<16x96xf32> to vector<16x8xf32>
    %cst_83 = arith.constant dense<0.000000e+00> : vector<16x16xf32>
    %185 = tpu.matmul %182, %183, %cst_83 {dimension_numbers = #tpu.dot_dimension_numbers<[1], [1], [0], [0], [0, 0, 1, 0], [], []>} : vector<16x8xf32>, vector<16x8xf32>, vector<16x16xf32> -> vector<16x16xf32>
    %186 = arith.addf %185, %1 : vector<16x16xf32>
    %cst_84 = arith.constant dense<0xFF800000> : vector<16xf32>
    %187 = vector.multi_reduction <maximumf>, %186, %cst_84 [1] : vector<16x16xf32> to vector<16xf32>
    %188 = vector.shape_cast %187 : vector<16xf32> to vector<16x1xf32>
    %189 = vector.broadcast %188 : vector<16x1xf32> to vector<16x16xf32>
    %190 = arith.subf %186, %189 : vector<16x16xf32>
    %191 = math.exp %190 : vector<16x16xf32>
    %cst_85 = arith.constant dense<0.000000e+00> : vector<16xf32>
    %192 = vector.multi_reduction <add>, %191, %cst_85 [1] : vector<16x16xf32> to vector<16xf32>
    %193 = vector.shape_cast %192 : vector<16xf32> to vector<16x1xf32>
    %194 = tpu.reciprocal %193 {approx = true} : vector<16x1xf32> -> vector<16x1xf32>
    %195 = vector.broadcast %194 : vector<16x1xf32> to vector<16x16xf32>
    %196 = arith.mulf %191, %195 : vector<16x16xf32>
    %197 = arith.addf %180, %196 : vector<16x16xf32>
    %cst_86 = arith.constant dense<0.000000e+00> : vector<16x8xf32>
    %198 = tpu.matmul %196, %184, %cst_86 {dimension_numbers = #tpu.dot_dimension_numbers<[1], [0], [0], [1], [0, 0, 1, 1], [], []>} : vector<16x16xf32>, vector<16x8xf32>, vector<16x8xf32> -> vector<16x8xf32>
    %199 = vector.extract_strided_slice %165 {offsets = [0, 16], sizes = [16, 8], strides = [1, 1]} : vector<16x96xf32> to vector<16x8xf32>
    %200 = vector.extract_strided_slice %165 {offsets = [0, 48], sizes = [16, 8], strides = [1, 1]} : vector<16x96xf32> to vector<16x8xf32>
    %201 = vector.extract_strided_slice %165 {offsets = [0, 80], sizes = [16, 8], strides = [1, 1]} : vector<16x96xf32> to vector<16x8xf32>
    %cst_87 = arith.constant dense<0.000000e+00> : vector<16x16xf32>
    %202 = tpu.matmul %199, %200, %cst_87 {dimension_numbers = #tpu.dot_dimension_numbers<[1], [1], [0], [0], [0, 0, 1, 0], [], []>} : vector<16x8xf32>, vector<16x8xf32>, vector<16x16xf32> -> vector<16x16xf32>
    %203 = arith.addf %202, %1 : vector<16x16xf32>
    %cst_88 = arith.constant dense<0xFF800000> : vector<16xf32>
    %204 = vector.multi_reduction <maximumf>, %203, %cst_88 [1] : vector<16x16xf32> to vector<16xf32>
    %205 = vector.shape_cast %204 : vector<16xf32> to vector<16x1xf32>
    %206 = vector.broadcast %205 : vector<16x1xf32> to vector<16x16xf32>
    %207 = arith.subf %203, %206 : vector<16x16xf32>
    %208 = math.exp %207 : vector<16x16xf32>
    %cst_89 = arith.constant dense<0.000000e+00> : vector<16xf32>
    %209 = vector.multi_reduction <add>, %208, %cst_89 [1] : vector<16x16xf32> to vector<16xf32>
    %210 = vector.shape_cast %209 : vector<16xf32> to vector<16x1xf32>
    %211 = tpu.reciprocal %210 {approx = true} : vector<16x1xf32> -> vector<16x1xf32>
    %212 = vector.broadcast %211 : vector<16x1xf32> to vector<16x16xf32>
    %213 = arith.mulf %208, %212 : vector<16x16xf32>
    %214 = arith.addf %197, %213 : vector<16x16xf32>
    %cst_90 = arith.constant dense<0.000000e+00> : vector<16x8xf32>
    %215 = tpu.matmul %213, %201, %cst_90 {dimension_numbers = #tpu.dot_dimension_numbers<[1], [0], [0], [1], [0, 0, 1, 1], [], []>} : vector<16x16xf32>, vector<16x8xf32>, vector<16x8xf32> -> vector<16x8xf32>
    %216 = vector.extract_strided_slice %165 {offsets = [0, 24], sizes = [16, 8], strides = [1, 1]} : vector<16x96xf32> to vector<16x8xf32>
    %217 = vector.extract_strided_slice %165 {offsets = [0, 56], sizes = [16, 8], strides = [1, 1]} : vector<16x96xf32> to vector<16x8xf32>
    %218 = vector.extract_strided_slice %165 {offsets = [0, 88], sizes = [16, 8], strides = [1, 1]} : vector<16x96xf32> to vector<16x8xf32>
    %cst_91 = arith.constant dense<0.000000e+00> : vector<16x16xf32>
    %219 = tpu.matmul %216, %217, %cst_91 {dimension_numbers = #tpu.dot_dimension_numbers<[1], [1], [0], [0], [0, 0, 1, 0], [], []>} : vector<16x8xf32>, vector<16x8xf32>, vector<16x16xf32> -> vector<16x16xf32>
    %220 = arith.addf %219, %1 : vector<16x16xf32>
    %cst_92 = arith.constant dense<0xFF800000> : vector<16xf32>
    %221 = vector.multi_reduction <maximumf>, %220, %cst_92 [1] : vector<16x16xf32> to vector<16xf32>
    %222 = vector.shape_cast %221 : vector<16xf32> to vector<16x1xf32>
    %223 = vector.broadcast %222 : vector<16x1xf32> to vector<16x16xf32>
    %224 = arith.subf %220, %223 : vector<16x16xf32>
    %225 = math.exp %224 : vector<16x16xf32>
    %cst_93 = arith.constant dense<0.000000e+00> : vector<16xf32>
    %226 = vector.multi_reduction <add>, %225, %cst_93 [1] : vector<16x16xf32> to vector<16xf32>
    %227 = vector.shape_cast %226 : vector<16xf32> to vector<16x1xf32>
    %228 = tpu.reciprocal %227 {approx = true} : vector<16x1xf32> -> vector<16x1xf32>
    %229 = vector.broadcast %228 : vector<16x1xf32> to vector<16x16xf32>
    %230 = arith.mulf %225, %229 : vector<16x16xf32>
    %231 = arith.addf %214, %230 : vector<16x16xf32>
    %cst_94 = arith.constant dense<0.000000e+00> : vector<16x8xf32>
    %232 = tpu.matmul %230, %218, %cst_94 {dimension_numbers = #tpu.dot_dimension_numbers<[1], [0], [0], [1], [0, 0, 1, 1], [], []>} : vector<16x16xf32>, vector<16x8xf32>, vector<16x8xf32> -> vector<16x8xf32>
    %cst_95 = arith.constant 2.500000e-01 : f32
    %233 = vector.broadcast %cst_95 : f32 to vector<16x16xf32>
    %234 = arith.mulf %231, %233 : vector<16x16xf32>
    %c1_96 = arith.constant 1 : index
    %c0_97 = arith.constant 0 : index
    %c0_98 = arith.constant 0 : index
    %235 = vector.load %arg15[%c1_96, %c0_97, %c0_98] : memref<2x16x16xf32, #tpu.memory_space<vmem>>, vector<1x16x16xf32>
    %236 = vector.shape_cast %235 : vector<1x16x16xf32> to vector<16x16xf32>
    %237 = vector.shape_cast %234 : vector<16x16xf32> to vector<1x16x16xf32>
    tpu.vector_store %arg15[%c1_96, %c0_97, %c0_98], %237 {strides = array<i32>} : memref<2x16x16xf32, #tpu.memory_space<vmem>>, vector<1x16x16xf32>,
    %238 = tpu.concatenate %181, %198, %215, %232 in 1 : vector<16x8xf32>, vector<16x8xf32>, vector<16x8xf32>, vector<16x8xf32> -> vector<16x32xf32>
    %c1_99 = arith.constant 1 : index
    %c0_100 = arith.constant 0 : index
    %c0_101 = arith.constant 0 : index
    %239 = vector.load %arg4[%c1_99, %c0_100, %c0_101] : memref<2x32x32xf32, #tpu.memory_space<vmem>>, vector<1x32x32xf32>
    %240 = vector.shape_cast %239 : vector<1x32x32xf32> to vector<32x32xf32>
    %cst_102 = arith.constant dense<0.000000e+00> : vector<16x32xf32>
    %241 = tpu.matmul %238, %240, %cst_102 {dimension_numbers = #tpu.dot_dimension_numbers<[1], [0], [0], [1], [0, 0, 1, 1], [], []>} : vector<16x32xf32>, vector<32x32xf32>, vector<16x32xf32> -> vector<16x32xf32>
    %c1_103 = arith.constant 1 : index
    %c0_104 = arith.constant 0 : index
    %c0_105 = arith.constant 0 : index
    %242 = vector.load %arg5[%c1_103, %c0_104, %c0_105] : memref<2x1x32xf32, #tpu.memory_space<vmem>>, vector<1x1x32xf32>
    %243 = vector.shape_cast %242 : vector<1x1x32xf32> to vector<1x32xf32>
    %244 = vector.broadcast %243 : vector<1x32xf32> to vector<16x32xf32>
    %245 = arith.addf %241, %244 : vector<16x32xf32>
    %246 = arith.addf %158, %245 : vector<16x32xf32>
    %c1_106 = arith.constant 1 : index
    %c0_107 = arith.constant 0 : index
    %c0_108 = arith.constant 0 : index
    %247 = vector.load %arg10[%c1_106, %c0_107, %c0_108] : memref<2x1x32xf32, #tpu.memory_space<vmem>>, vector<1x1x32xf32>
    %248 = vector.shape_cast %247 : vector<1x1x32xf32> to vector<1x32xf32>
    %c1_109 = arith.constant 1 : index
    %c0_110 = arith.constant 0 : index
    %c0_111 = arith.constant 0 : index
    %249 = vector.load %arg11[%c1_109, %c0_110, %c0_111] : memref<2x1x32xf32, #tpu.memory_space<vmem>>, vector<1x1x32xf32>
    %250 = vector.shape_cast %249 : vector<1x1x32xf32> to vector<1x32xf32>
    %cst_112 = arith.constant dense<0.000000e+00> : vector<16xf32>
    %251 = vector.multi_reduction <add>, %246, %cst_112 [1] : vector<16x32xf32> to vector<16xf32>
    %252 = vector.shape_cast %251 : vector<16xf32> to vector<16x1xf32>
    %cst_113 = arith.constant 3.200000e+01 : f32
    %253 = vector.broadcast %cst_113 : f32 to vector<16x1xf32>
    %254 = arith.divf %252, %253 : vector<16x1xf32>
    %255 = vector.broadcast %254 : vector<16x1xf32> to vector<16x32xf32>
    %256 = arith.subf %246, %255 : vector<16x32xf32>
    %257 = arith.mulf %256, %256 : vector<16x32xf32>
    %cst_114 = arith.constant dense<0.000000e+00> : vector<16xf32>
    %258 = vector.multi_reduction <add>, %257, %cst_114 [1] : vector<16x32xf32> to vector<16xf32>
    %259 = vector.shape_cast %258 : vector<16xf32> to vector<16x1xf32>
    %cst_115 = arith.constant 3.200000e+01 : f32
    %260 = vector.broadcast %cst_115 : f32 to vector<16x1xf32>
    %261 = arith.divf %259, %260 : vector<16x1xf32>
    %262 = vector.broadcast %254 : vector<16x1xf32> to vector<16x32xf32>
    %263 = arith.subf %246, %262 : vector<16x32xf32>
    %cst_116 = arith.constant 9.99999974E-6 : f32
    %264 = vector.broadcast %cst_116 : f32 to vector<16x1xf32>
    %265 = arith.addf %261, %264 : vector<16x1xf32>
    %266 = math.rsqrt %265 : vector<16x1xf32>
    %267 = vector.broadcast %266 : vector<16x1xf32> to vector<16x32xf32>
    %268 = arith.mulf %263, %267 : vector<16x32xf32>
    %269 = vector.broadcast %248 : vector<1x32xf32> to vector<16x32xf32>
    %270 = arith.mulf %268, %269 : vector<16x32xf32>
    %271 = vector.broadcast %250 : vector<1x32xf32> to vector<16x32xf32>
    %272 = arith.addf %270, %271 : vector<16x32xf32>
    %c1_117 = arith.constant 1 : index
    %c0_118 = arith.constant 0 : index
    %c0_119 = arith.constant 0 : index
    %273 = vector.load %arg6[%c1_117, %c0_118, %c0_119] : memref<2x32x64xf32, #tpu.memory_space<vmem>>, vector<1x32x64xf32>
    %274 = vector.shape_cast %273 : vector<1x32x64xf32> to vector<32x64xf32>
    %cst_120 = arith.constant dense<0.000000e+00> : vector<16x64xf32>
    %275 = tpu.matmul %272, %274, %cst_120 {dimension_numbers = #tpu.dot_dimension_numbers<[1], [0], [0], [1], [0, 0, 1, 1], [], []>} : vector<16x32xf32>, vector<32x64xf32>, vector<16x64xf32> -> vector<16x64xf32>
    %c1_121 = arith.constant 1 : index
    %c0_122 = arith.constant 0 : index
    %c0_123 = arith.constant 0 : index
    %276 = vector.load %arg7[%c1_121, %c0_122, %c0_123] : memref<2x1x64xf32, #tpu.memory_space<vmem>>, vector<1x1x64xf32>
    %277 = vector.shape_cast %276 : vector<1x1x64xf32> to vector<1x64xf32>
    %278 = vector.broadcast %277 : vector<1x64xf32> to vector<16x64xf32>
    %279 = arith.addf %275, %278 : vector<16x64xf32>
    %cst_124 = arith.constant 0.000000e+00 : f32
    %280 = vector.broadcast %cst_124 : f32 to vector<16x64xf32>
    %281 = arith.maximumf %279, %280 : vector<16x64xf32>
    %c1_125 = arith.constant 1 : index
    %c0_126 = arith.constant 0 : index
    %c0_127 = arith.constant 0 : index
    %282 = vector.load %arg8[%c1_125, %c0_126, %c0_127] : memref<2x64x32xf32, #tpu.memory_space<vmem>>, vector<1x64x32xf32>
    %283 = vector.shape_cast %282 : vector<1x64x32xf32> to vector<64x32xf32>
    %cst_128 = arith.constant dense<0.000000e+00> : vector<16x32xf32>
    %284 = tpu.matmul %281, %283, %cst_128 {dimension_numbers = #tpu.dot_dimension_numbers<[1], [0], [0], [1], [0, 0, 1, 1], [], []>} : vector<16x64xf32>, vector<64x32xf32>, vector<16x32xf32> -> vector<16x32xf32>
    %c1_129 = arith.constant 1 : index
    %c0_130 = arith.constant 0 : index
    %c0_131 = arith.constant 0 : index
    %285 = vector.load %arg9[%c1_129, %c0_130, %c0_131] : memref<2x1x32xf32, #tpu.memory_space<vmem>>, vector<1x1x32xf32>
    %286 = vector.shape_cast %285 : vector<1x1x32xf32> to vector<1x32xf32>
    %287 = vector.broadcast %286 : vector<1x32xf32> to vector<16x32xf32>
    %288 = arith.addf %284, %287 : vector<16x32xf32>
    %289 = arith.addf %272, %288 : vector<16x32xf32>
    %c1_132 = arith.constant 1 : index
    %c0_133 = arith.constant 0 : index
    %c0_134 = arith.constant 0 : index
    %290 = vector.load %arg12[%c1_132, %c0_133, %c0_134] : memref<2x1x32xf32, #tpu.memory_space<vmem>>, vector<1x1x32xf32>
    %291 = vector.shape_cast %290 : vector<1x1x32xf32> to vector<1x32xf32>
    %c1_135 = arith.constant 1 : index
    %c0_136 = arith.constant 0 : index
    %c0_137 = arith.constant 0 : index
    %292 = vector.load %arg13[%c1_135, %c0_136, %c0_137] : memref<2x1x32xf32, #tpu.memory_space<vmem>>, vector<1x1x32xf32>
    %293 = vector.shape_cast %292 : vector<1x1x32xf32> to vector<1x32xf32>
    %cst_138 = arith.constant dense<0.000000e+00> : vector<16xf32>
    %294 = vector.multi_reduction <add>, %289, %cst_138 [1] : vector<16x32xf32> to vector<16xf32>
    %295 = vector.shape_cast %294 : vector<16xf32> to vector<16x1xf32>
    %cst_139 = arith.constant 3.200000e+01 : f32
    %296 = vector.broadcast %cst_139 : f32 to vector<16x1xf32>
    %297 = arith.divf %295, %296 : vector<16x1xf32>
    %298 = vector.broadcast %297 : vector<16x1xf32> to vector<16x32xf32>
    %299 = arith.subf %289, %298 : vector<16x32xf32>
    %300 = arith.mulf %299, %299 : vector<16x32xf32>
    %cst_140 = arith.constant dense<0.000000e+00> : vector<16xf32>
    %301 = vector.multi_reduction <add>, %300, %cst_140 [1] : vector<16x32xf32> to vector<16xf32>
    %302 = vector.shape_cast %301 : vector<16xf32> to vector<16x1xf32>
    %cst_141 = arith.constant 3.200000e+01 : f32
    %303 = vector.broadcast %cst_141 : f32 to vector<16x1xf32>
    %304 = arith.divf %302, %303 : vector<16x1xf32>
    %305 = vector.broadcast %297 : vector<16x1xf32> to vector<16x32xf32>
    %306 = arith.subf %289, %305 : vector<16x32xf32>
    %cst_142 = arith.constant 9.99999974E-6 : f32
    %307 = vector.broadcast %cst_142 : f32 to vector<16x1xf32>
    %308 = arith.addf %304, %307 : vector<16x1xf32>
    %309 = math.rsqrt %308 : vector<16x1xf32>
    %310 = vector.broadcast %309 : vector<16x1xf32> to vector<16x32xf32>
    %311 = arith.mulf %306, %310 : vector<16x32xf32>
    %312 = vector.broadcast %291 : vector<1x32xf32> to vector<16x32xf32>
    %313 = arith.mulf %311, %312 : vector<16x32xf32>
    %314 = vector.broadcast %293 : vector<1x32xf32> to vector<16x32xf32>
    %315 = arith.addf %313, %314 : vector<16x32xf32>
    %c0_143 = arith.constant 0 : index
    %c0_144 = arith.constant 0 : index
    %316 = vector.load %arg14[%c0_143, %c0_144] : memref<16x32xf32, #tpu.memory_space<vmem>>, vector<16x32xf32>
    tpu.vector_store %arg14[%c0_143, %c0_144], %315 {strides = array<i32>} : memref<16x32xf32, #tpu.memory_space<vmem>>, vector<16x32xf32>,
    return
  }
}

</mosaic_0001>

<llo_original>
// kernel: base_transformer_forward.1
$region0: #{base_transformer_forward.1}
  #allocation0 [shape = 'u32[]', space=smem, size = 0x4, offset = 0x4, fixed_abs, tag = 'smem constant byte address 0x4 - core index']
  #allocation1 [shape = 'u32[72,128]{1,0:T(1,128)}', space=vmem, size = 0x9000, scoped, tag = 'internal scratch']
  %s0 = inlined_call_operand.vmem [shape: f32[16,32], index: 0, kind: input, shape index: {}]
  %s1 = inlined_call_operand.vmem [shape: f32[16,16], index: 1, kind: input, shape index: {}]
  %s2 = inlined_call_operand.vmem [shape: f32[2,32,96], index: 2, kind: input, shape index: {}]
  %s3 = inlined_call_operand.vmem [shape: f32[2,1,96], index: 3, kind: input, shape index: {}]
  %s4 = inlined_call_operand.vmem [shape: f32[2,32,32], index: 4, kind: input, shape index: {}]
  %s5 = inlined_call_operand.vmem [shape: f32[2,1,32], index: 5, kind: input, shape index: {}]
  %s6 = inlined_call_operand.vmem [shape: f32[2,32,64], index: 6, kind: input, shape index: {}]
  %s7 = inlined_call_operand.vmem [shape: f32[2,1,64], index: 7, kind: input, shape index: {}]
  %s8 = inlined_call_operand.vmem [shape: f32[2,64,32], index: 8, kind: input, shape index: {}]
  %s9 = inlined_call_operand.vmem [shape: f32[2,1,32], index: 9, kind: input, shape index: {}]
  %s10 = inlined_call_operand.vmem [shape: f32[2,1,32], index: 10, kind: input, shape index: {}]
  %s11 = inlined_call_operand.vmem [shape: f32[2,1,32], index: 11, kind: input, shape index: {}]
  %s12 = inlined_call_operand.vmem [shape: f32[2,1,32], index: 12, kind: input, shape index: {}]
  %s13 = inlined_call_operand.vmem [shape: f32[2,1,32], index: 13, kind: input, shape index: {}]
  %s14 = inlined_call_operand.vmem [shape: f32[16,32], index: 14, kind: output, shape index: {0}]
  %s15 = inlined_call_operand.vmem [shape: f32[2,16,16], index: 15, kind: output, shape index: {1}]
  %16 = xla_tuple %s14, %s15
  %s17 = sld [smem:[#allocation0]]
  $region74: #{base_transformer_forward.1} parent=0
    _
  %s19 = ssub.s32 1, %s17
  %s20 = scalar_select 0, %s19, %s17
  // Predicated region
  $region2: #{base_transformer_forward.1} parent=0 // pred_check
    _
  $region3: #{base_transformer_forward.1} parent=0 // pred_check_branch
    %22 = sbr.rel (0) target = $region5
  $region4: #{base_transformer_forward.1} parent=0 // pred_region
    _
  $region5: #{base_transformer_forward.1} parent=0 // pred_fallthru
    _
  // Predicated region
  $region6: #{base_transformer_forward.1} parent=0 // pred_check
    _
  $region7: #{base_transformer_forward.1} parent=0 // pred_check_branch
    %24 = sbr.rel (0) target = $region9
  $region8: #{base_transformer_forward.1} parent=0 // pred_region
    _
  $region9: #{base_transformer_forward.1} parent=0 // pred_fallthru
    _
  // Predicated region
  $region10: #{base_transformer_forward.1} parent=0 // pred_check
    _
  $region11: #{base_transformer_forward.1} parent=0 // pred_check_branch
    %26 = sbr.rel (0) target = $region13
  $region12: #{base_transformer_forward.1} parent=0 // pred_region
    _
  $region13: #{base_transformer_forward.1} parent=0 // pred_fallthru
    _
  // Predicated region
  $region14: #{base_transformer_forward.1} parent=0 // pred_check
    _
  $region15: #{base_transformer_forward.1} parent=0 // pred_check_branch
    %28 = sbr.rel (0) target = $region17
  $region16: #{base_transformer_forward.1} parent=0 // pred_region
    _
  $region17: #{base_transformer_forward.1} parent=0 // pred_fallthru
    _
  // Predicated region
  $region18: #{base_transformer_forward.1} parent=0 // pred_check
    _
  $region19: #{base_transformer_forward.1} parent=0 // pred_check_branch
    %30 = sbr.rel (0) target = $region21
  $region20: #{base_transformer_forward.1} parent=0 // pred_region
    _
  $region21: #{base_transformer_forward.1} parent=0 // pred_fallthru
    _
  // Predicated region
  $region22: #{base_transformer_forward.1} parent=0 // pred_check
    _
  $region23: #{base_transformer_forward.1} parent=0 // pred_check_branch
    %32 = sbr.rel (0) target = $region25
  $region24: #{base_transformer_forward.1} parent=0 // pred_region
    _
  $region25: #{base_transformer_forward.1} parent=0 // pred_fallthru
    _
  // Predicated region
  $region26: #{base_transformer_forward.1} parent=0 // pred_check
    _
  $region27: #{base_transformer_forward.1} parent=0 // pred_check_branch
    %34 = sbr.rel (0) target = $region29
  $region28: #{base_transformer_forward.1} parent=0 // pred_region
    _
  $region29: #{base_transformer_forward.1} parent=0 // pred_fallthru
    _
  // Predicated region
  $region30: #{base_transformer_forward.1} parent=0 // pred_check
    _
  $region31: #{base_transformer_forward.1} parent=0 // pred_check_branch
    %36 = sbr.rel (0) target = $region33
  $region32: #{base_transformer_forward.1} parent=0 // pred_region
    _
  $region33: #{base_transformer_forward.1} parent=0 // pred_fallthru
    _
  // Predicated region
  $region34: #{base_transformer_forward.1} parent=0 // pred_check
    _
  $region35: #{base_transformer_forward.1} parent=0 // pred_check_branch
    %38 = sbr.rel (0) target = $region37
  $region36: #{base_transformer_forward.1} parent=0 // pred_region
    _
  $region37: #{base_transformer_forward.1} parent=0 // pred_fallthru
    _
  // Predicated region
  $region38: #{base_transformer_forward.1} parent=0 // pred_check
    _
  $region39: #{base_transformer_forward.1} parent=0 // pred_check_branch
    %40 = sbr.rel (0) target = $region41
  $region40: #{base_transformer_forward.1} parent=0 // pred_region
    _
  $region41: #{base_transformer_forward.1} parent=0 // pred_fallthru
    _
  // Predicated region
  $region42: #{base_transformer_forward.1} parent=0 // pred_check
    _
  $region43: #{base_transformer_forward.1} parent=0 // pred_check_branch
    %42 = sbr.rel (0) target = $region45
  $region44: #{base_transformer_forward.1} parent=0 // pred_region
    _
  $region45: #{base_transformer_forward.1} parent=0 // pred_fallthru
    _
  // Predicated region
  $region46: #{base_transformer_forward.1} parent=0 // pred_check
    _
  $region47: #{base_transformer_forward.1} parent=0 // pred_check_branch
    %44 = sbr.rel (0) target = $region49
  $region48: #{base_transformer_forward.1} parent=0 // pred_region
    _
  $region49: #{base_transformer_forward.1} parent=0 // pred_fallthru
    _
  // Predicated region
  $region50: #{base_transformer_forward.1} parent=0 // pred_check
    _
  $region51: #{base_transformer_forward.1} parent=0 // pred_check_branch
    %46 = sbr.rel (0) target = $region53
  $region52: #{base_transformer_forward.1} parent=0 // pred_region
    _
  $region53: #{base_transformer_forward.1} parent=0 // pred_fallthru
    _
  // Predicated region
  $region54: #{base_transformer_forward.1} parent=0 // pred_check
    _
  $region55: #{base_transformer_forward.1} parent=0 // pred_check_branch
    %48 = sbr.rel (0) target = $region57
  $region56: #{base_transformer_forward.1} parent=0 // pred_region
    _
  $region57: #{base_transformer_forward.1} parent=0 // pred_fallthru
    _
  %v49 = vld [vmem:[%s0] sm:$0xff]
  %v50 = vld [vmem:[%s0 + $0x8] sm:$0xff]
  %v51 = vld [vmem:[%s1] sm:$0xff]
  %v52 = vld [vmem:[%s1 + $0x8] sm:$0xff]
  %v53 = vld [vmem:[%s2] sm:$0xff]
  %v54 = vld [vmem:[%s2 + $0x8] sm:$0xff]
  %v55 = vld [vmem:[%s2 + $0x10] sm:$0xff]
  %v56 = vld [vmem:[%s2 + $0x18] sm:$0xff]
  %v57 = vld [vmem:[%s3] sm:$0x1]
  %v59 = vperm.slane %v57, 0
  %vm61 = vcmask 261120
  %v63 = vsel %vm61, %v49, 0
  %v66 = vsel %vm61, %v50, 0
  %68 = vmatpush.msra.mxu0 0.0
  %69 = vmatpush.msra.mxu0 0.0
  %70 = vmatpush.msra.mxu0 0.0
  %71 = vmatpush.msra.mxu0 0.0
  %72 = vmatpush.msra.mxu0 0.0
  %73 = vmatpush.msra.mxu0 0.0
  %74 = vmatpush.msra.mxu0 0.0
  %75 = vmatpush.msra.mxu0 0.0
  %76 = vmatpush.msra.mxu0 0.0
  %77 = vmatpush.msra.mxu0 0.0
  %78 = vmatpush.msra.mxu0 0.0
  %79 = vmatpush.msra.mxu0 0.0
  %80 = vmatpush.msra.mxu0 %v56
  %81 = vmatpush.msra.mxu0 %v55
  %82 = vmatpush.msra.mxu0 %v54
  %83 = vmatpush.msra.mxu0 %v53
  %84 = vmatmul.f32.gmra.mxu0 %v63
  %v85 = vpop.f32.mrf.mxu0
  %v86 = vadd.f32 %v59, %v85
  %87 = vmatmul.f32.gmra.mxu0 %v66
  %v88 = vpop.f32.mrf.mxu0
  %v89 = vadd.f32 %v59, %v88
  %90 = vdwg.mxu0
  %93 = vrot.lane.b32.xlu0 %v86, 96
  %v94 = vpop.permute.xlu0 %93
  %95 = vrot.lane.b32.xlu0 %v89, 96
  %v96 = vpop.permute.xlu0 %95
  %vm97 = vcmask 64512
  %v98 = vsel %vm97, %v86, 0
  %v100 = vsel %vm97, %v89, 0
  %v102 = vsel %vm97, %v94, 0
  %v104 = vsel %vm97, %v96, 0
  %106 = vmatpush.xpose.msra.mxu0 0.0
  %107 = vmatpush.xpose.msra.mxu0 0.0
  %108 = vmatpush.xpose.msra.mxu0 0.0
  %109 = vmatpush.xpose.msra.mxu0 0.0
  %110 = vmatpush.xpose.msra.mxu0 0.0
  %111 = vmatpush.xpose.msra.mxu0 0.0
  %112 = vmatpush.xpose.msra.mxu0 0.0
  %113 = vmatpush.xpose.msra.mxu0 0.0
  %114 = vmatpush.xpose.msra.mxu0 0.0
  %115 = vmatpush.xpose.msra.mxu0 0.0
  %116 = vmatpush.xpose.msra.mxu0 0.0
  %117 = vmatpush.xpose.msra.mxu0 0.0
  %118 = vmatpush.xpose.msra.mxu0 0.0
  %119 = vmatpush.xpose.msra.mxu0 0.0
  %120 = vmatpush.xpose.msra.mxu0 %v104
  %121 = vmatpush.xpose.msra.mxu0 %v102
  %122 = vmatmul.f32.gmra.mxu0 %v98
  %v123 = vpop.f32.mrf.mxu0
  %v124 = vadd.f32 %v51, %v123
  %125 = vmatmul.f32.gmra.mxu0 %v100
  %v126 = vpop.f32.mrf.mxu0
  %v127 = vadd.f32 %v52, %v126
  %128 = vdwg.mxu0
  %vm129 = vcmask 130048
  %v130 = vsel %vm129, %v124, -inf
  %131 = vmax.xlane.f32.xlu0 %v130
  %v132 = vpop.xlane.xlu0 %131
  %v133 = vsel %vm129, %v127, -inf
  %134 = vmax.xlane.f32.xlu0 %v133
  %v135 = vpop.xlane.xlu0 %134
  %v136 = vsub.f32 %v124, %v132
  %v137 = vsub.f32 %v127, %v135
  %v138 = vmul.f32 %v136, 1.442695
  %v139 = vpow.pop %v138
  %v140 = vmul.f32 %v137, 1.442695
  %v141 = vpow.pop %v140
  %v142 = vsel %vm129, %v139, 0.0
  %143 = vadd.xlane.f32.xlu0 %v142
  %v144 = vpop.xlane.xlu0 %143
  %v145 = vsel %vm129, %v141, 0.0
  %146 = vadd.xlane.f32.xlu0 %v145
  %v147 = vpop.xlane.xlu0 %146
  %v148 = vrcp.pop %v144
  %v149 = vrcp.pop %v147
  %v150 = vmul.f32 %v139, %v148
  %v151 = vmul.f32 %v141, %v149
  %152 = vrot.lane.b32.xlu0 %v86, 64
  %v153 = vpop.permute.xlu0 %152
  %154 = vrot.lane.b32.xlu0 %v89, 64
  %v155 = vpop.permute.xlu0 %154
  %v159 = vsel %vm129, %v150, 0
  %v162 = vsel %vm129, %v151, 0
  %164 = vmatpush.msra.mxu0 0.0
  %165 = vmatpush.msra.mxu0 0.0
  %166 = vmatpush.msra.mxu0 0.0
  %167 = vmatpush.msra.mxu0 0.0
  %168 = vmatpush.msra.mxu0 0.0
  %169 = vmatpush.msra.mxu0 0.0
  %170 = vmatpush.msra.mxu0 0.0
  %171 = vmatpush.msra.mxu0 0.0
  %172 = vmatpush.msra.mxu0 0.0
  %173 = vmatpush.msra.mxu0 0.0
  %174 = vmatpush.msra.mxu0 0.0
  %175 = vmatpush.msra.mxu0 0.0
  %176 = vmatpush.msra.mxu0 0.0
  %177 = vmatpush.msra.mxu0 0.0
  %178 = vmatpush.msra.mxu0 %v155
  %179 = vmatpush.msra.mxu0 %v153
  %180 = vmatmul.f32.gmra.mxu0 %v159
  %v181 = vpop.f32.mrf.mxu0
  %v182 = vadd.f32 0.0, %v181
  %183 = vmatmul.f32.gmra.mxu0 %v162
  %v184 = vpop.f32.mrf.mxu0
  %v185 = vadd.f32 0.0, %v184
  %186 = vdwg.mxu0
  %187 = vrot.lane.b32.xlu0 %v86, 120
  %v188 = vpop.permute.xlu0 %187
  %189 = vrot.lane.b32.xlu0 %v89, 120
  %v190 = vpop.permute.xlu0 %189
  %191 = vrot.lane.b32.xlu0 %v86, 88
  %v192 = vpop.permute.xlu0 %191
  %193 = vrot.lane.b32.xlu0 %v89, 88
  %v194 = vpop.permute.xlu0 %193
  %v195 = vsel %vm97, %v188, 0
  %v197 = vsel %vm97, %v190, 0
  %v199 = vsel %vm97, %v192, 0
  %v201 = vsel %vm97, %v194, 0
  %203 = vmatpush.xpose.msra.mxu0 0.0
  %204 = vmatpush.xpose.msra.mxu0 0.0
  %205 = vmatpush.xpose.msra.mxu0 0.0
  %206 = vmatpush.xpose.msra.mxu0 0.0
  %207 = vmatpush.xpose.msra.mxu0 0.0
  %208 = vmatpush.xpose.msra.mxu0 0.0
  %209 = vmatpush.xpose.msra.mxu0 0.0
  %210 = vmatpush.xpose.msra.mxu0 0.0
  %211 = vmatpush.xpose.msra.mxu0 0.0
  %212 = vmatpush.xpose.msra.mxu0 0.0
  %213 = vmatpush.xpose.msra.mxu0 0.0
  %214 = vmatpush.xpose.msra.mxu0 0.0
  %215 = vmatpush.xpose.msra.mxu0 0.0
  %216 = vmatpush.xpose.msra.mxu0 0.0
  %217 = vmatpush.xpose.msra.mxu0 %v201
  %218 = vmatpush.xpose.msra.mxu0 %v199
  %219 = vmatmul.f32.gmra.mxu0 %v195
  %v220 = vpop.f32.mrf.mxu0
  %v221 = vadd.f32 %v51, %v220
  %222 = vmatmul.f32.gmra.mxu0 %v197
  %v223 = vpop.f32.mrf.mxu0
  %v224 = vadd.f32 %v52, %v223
  %225 = vdwg.mxu0
  %v226 = vsel %vm129, %v221, -inf
  %227 = vmax.xlane.f32.xlu0 %v226
  %v228 = vpop.xlane.xlu0 %227
  %v229 = vsel %vm129, %v224, -inf
  %230 = vmax.xlane.f32.xlu0 %v229
  %v231 = vpop.xlane.xlu0 %230
  %v232 = vsub.f32 %v221, %v228
  %v233 = vsub.f32 %v224, %v231
  %v234 = vmul.f32 %v232, 1.442695
  %v235 = vpow.pop %v234
  %v236 = vmul.f32 %v233, 1.442695
  %v237 = vpow.pop %v236
  %v238 = vsel %vm129, %v235, 0.0
  %239 = vadd.xlane.f32.xlu0 %v238
  %v240 = vpop.xlane.xlu0 %239
  %v241 = vsel %vm129, %v237, 0.0
  %242 = vadd.xlane.f32.xlu0 %v241
  %v243 = vpop.xlane.xlu0 %242
  %v244 = vrcp.pop %v240
  %v245 = vrcp.pop %v243
  %v246 = vmul.f32 %v235, %v244
  %v247 = vmul.f32 %v237, %v245
  %v248 = vadd.f32 %v150, %v246
  %v249 = vadd.f32 %v151, %v247
  %250 = vrot.lane.b32.xlu0 %v86, 56
  %v251 = vpop.permute.xlu0 %250
  %252 = vrot.lane.b32.xlu0 %v89, 56
  %v253 = vpop.permute.xlu0 %252
  %v257 = vsel %vm129, %v246, 0
  %v260 = vsel %vm129, %v247, 0
  %262 = vmatpush.msra.mxu0 0.0
  %263 = vmatpush.msra.mxu0 0.0
  %264 = vmatpush.msra.mxu0 0.0
  %265 = vmatpush.msra.mxu0 0.0
  %266 = vmatpush.msra.mxu0 0.0
  %267 = vmatpush.msra.mxu0 0.0
  %268 = vmatpush.msra.mxu0 0.0
  %269 = vmatpush.msra.mxu0 0.0
  %270 = vmatpush.msra.mxu0 0.0
  %271 = vmatpush.msra.mxu0 0.0
  %272 = vmatpush.msra.mxu0 0.0
  %273 = vmatpush.msra.mxu0 0.0
  %274 = vmatpush.msra.mxu0 0.0
  %275 = vmatpush.msra.mxu0 0.0
  %276 = vmatpush.msra.mxu0 %v253
  %277 = vmatpush.msra.mxu0 %v251
  %278 = vmatmul.f32.gmra.mxu0 %v257
  %v279 = vpop.f32.mrf.mxu0
  %v280 = vadd.f32 0.0, %v279
  %281 = vmatmul.f32.gmra.mxu0 %v260
  %v282 = vpop.f32.mrf.mxu0
  %v283 = vadd.f32 0.0, %v282
  %284 = vdwg.mxu0
  %285 = vrot.lane.b32.xlu0 %v86, 112
  %v286 = vpop.permute.xlu0 %285
  %287 = vrot.lane.b32.xlu0 %v89, 112
  %v288 = vpop.permute.xlu0 %287
  %289 = vrot.lane.b32.xlu0 %v86, 80
  %v290 = vpop.permute.xlu0 %289
  %291 = vrot.lane.b32.xlu0 %v89, 80
  %v292 = vpop.permute.xlu0 %291
  %v293 = vsel %vm97, %v286, 0
  %v295 = vsel %vm97, %v288, 0
  %v297 = vsel %vm97, %v290, 0
  %v299 = vsel %vm97, %v292, 0
  %301 = vmatpush.xpose.msra.mxu0 0.0
  %302 = vmatpush.xpose.msra.mxu0 0.0
  %303 = vmatpush.xpose.msra.mxu0 0.0
  %304 = vmatpush.xpose.msra.mxu0 0.0
  %305 = vmatpush.xpose.msra.mxu0 0.0
  %306 = vmatpush.xpose.msra.mxu0 0.0
  %307 = vmatpush.xpose.msra.mxu0 0.0
  %308 = vmatpush.xpose.msra.mxu0 0.0
  %309 = vmatpush.xpose.msra.mxu0 0.0
  %310 = vmatpush.xpose.msra.mxu0 0.0
  %311 = vmatpush.xpose.msra.mxu0 0.0
  %312 = vmatpush.xpose.msra.mxu0 0.0
  %313 = vmatpush.xpose.msra.mxu0 0.0
  %314 = vmatpush.xpose.msra.mxu0 0.0
  %315 = vmatpush.xpose.msra.mxu0 %v299
  %316 = vmatpush.xpose.msra.mxu0 %v297
  %317 = vmatmul.f32.gmra.mxu0 %v293
  %v318 = vpop.f32.mrf.mxu0
  %v319 = vadd.f32 %v51, %v318
  %320 = vmatmul.f32.gmra.mxu0 %v295
  %v321 = vpop.f32.mrf.mxu0
  %v322 = vadd.f32 %v52, %v321
  %323 = vdwg.mxu0
  %v324 = vsel %vm129, %v319, -inf
  %325 = vmax.xlane.f32.xlu0 %v324
  %v326 = vpop.xlane.xlu0 %325
  %v327 = vsel %vm129, %v322, -inf
  %328 = vmax.xlane.f32.xlu0 %v327
  %v329 = vpop.xlane.xlu0 %328
  %v330 = vsub.f32 %v319, %v326
  %v331 = vsub.f32 %v322, %v329
  %v332 = vmul.f32 %v330, 1.442695
  %v333 = vpow.pop %v332
  %v334 = vmul.f32 %v331, 1.442695
  %v335 = vpow.pop %v334
  %v336 = vsel %vm129, %v333, 0.0
  %337 = vadd.xlane.f32.xlu0 %v336
  %v338 = vpop.xlane.xlu0 %337
  %v339 = vsel %vm129, %v335, 0.0
  %340 = vadd.xlane.f32.xlu0 %v339
  %v341 = vpop.xlane.xlu0 %340
  %v342 = vrcp.pop %v338
  %v343 = vrcp.pop %v341
  %v344 = vmul.f32 %v333, %v342
  %v345 = vmul.f32 %v335, %v343
  %v346 = vadd.f32 %v248, %v344
  %v347 = vadd.f32 %v249, %v345
  %348 = vrot.lane.b32.xlu0 %v86, 48
  %v349 = vpop.permute.xlu0 %348
  %350 = vrot.lane.b32.xlu0 %v89, 48
  %v351 = vpop.permute.xlu0 %350
  %v355 = vsel %vm129, %v344, 0
  %v358 = vsel %vm129, %v345, 0
  %360 = vmatpush.msra.mxu0 0.0
  %361 = vmatpush.msra.mxu0 0.0
  %362 = vmatpush.msra.mxu0 0.0
  %363 = vmatpush.msra.mxu0 0.0
  %364 = vmatpush.msra.mxu0 0.0
  %365 = vmatpush.msra.mxu0 0.0
  %366 = vmatpush.msra.mxu0 0.0
  %367 = vmatpush.msra.mxu0 0.0
  %368 = vmatpush.msra.mxu0 0.0
  %369 = vmatpush.msra.mxu0 0.0
  %370 = vmatpush.msra.mxu0 0.0
  %371 = vmatpush.msra.mxu0 0.0
  %372 = vmatpush.msra.mxu0 0.0
  %373 = vmatpush.msra.mxu0 0.0
  %374 = vmatpush.msra.mxu0 %v351
  %375 = vmatpush.msra.mxu0 %v349
  %376 = vmatmul.f32.gmra.mxu0 %v355
  %v377 = vpop.f32.mrf.mxu0
  %v378 = vadd.f32 0.0, %v377
  %379 = vmatmul.f32.gmra.mxu0 %v358
  %v380 = vpop.f32.mrf.mxu0
  %v381 = vadd.f32 0.0, %v380
  %382 = vdwg.mxu0
  %383 = vrot.lane.b32.xlu0 %v86, 104
  %v384 = vpop.permute.xlu0 %383
  %385 = vrot.lane.b32.xlu0 %v89, 104
  %v386 = vpop.permute.xlu0 %385
  %387 = vrot.lane.b32.xlu0 %v86, 72
  %v388 = vpop.permute.xlu0 %387
  %389 = vrot.lane.b32.xlu0 %v89, 72
  %v390 = vpop.permute.xlu0 %389
  %v391 = vsel %vm97, %v384, 0
  %v393 = vsel %vm97, %v386, 0
  %v395 = vsel %vm97, %v388, 0
  %v397 = vsel %vm97, %v390, 0
  %399 = vmatpush.xpose.msra.mxu0 0.0
  %400 = vmatpush.xpose.msra.mxu0 0.0
  %401 = vmatpush.xpose.msra.mxu0 0.0
  %402 = vmatpush.xpose.msra.mxu0 0.0
  %403 = vmatpush.xpose.msra.mxu0 0.0
  %404 = vmatpush.xpose.msra.mxu0 0.0
  %405 = vmatpush.xpose.msra.mxu0 0.0
  %406 = vmatpush.xpose.msra.mxu0 0.0
  %407 = vmatpush.xpose.msra.mxu0 0.0
  %408 = vmatpush.xpose.msra.mxu0 0.0
  %409 = vmatpush.xpose.msra.mxu0 0.0
  %410 = vmatpush.xpose.msra.mxu0 0.0
  %411 = vmatpush.xpose.msra.mxu0 0.0
  %412 = vmatpush.xpose.msra.mxu0 0.0
  %413 = vmatpush.xpose.msra.mxu0 %v397
  %414 = vmatpush.xpose.msra.mxu0 %v395
  %415 = vmatmul.f32.gmra.mxu0 %v391
  %v416 = vpop.f32.mrf.mxu0
  %v417 = vadd.f32 %v51, %v416
  %418 = vmatmul.f32.gmra.mxu0 %v393
  %v419 = vpop.f32.mrf.mxu0
  %v420 = vadd.f32 %v52, %v419
  %421 = vdwg.mxu0
  %v422 = vsel %vm129, %v417, -inf
  %423 = vmax.xlane.f32.xlu0 %v422
  %v424 = vpop.xlane.xlu0 %423
  %v425 = vsel %vm129, %v420, -inf
  %426 = vmax.xlane.f32.xlu0 %v425
  %v427 = vpop.xlane.xlu0 %426
  %v428 = vsub.f32 %v417, %v424
  %v429 = vsub.f32 %v420, %v427
  %v430 = vmul.f32 %v428, 1.442695
  %v431 = vpow.pop %v430
  %v432 = vmul.f32 %v429, 1.442695
  %v433 = vpow.pop %v432
  %v434 = vsel %vm129, %v431, 0.0
  %435 = vadd.xlane.f32.xlu0 %v434
  %v436 = vpop.xlane.xlu0 %435
  %v437 = vsel %vm129, %v433, 0.0
  %438 = vadd.xlane.f32.xlu0 %v437
  %v439 = vpop.xlane.xlu0 %438
  %v440 = vrcp.pop %v436
  %v441 = vrcp.pop %v439
  %v442 = vmul.f32 %v431, %v440
  %v443 = vmul.f32 %v433, %v441
  %v444 = vadd.f32 %v346, %v442
  %v445 = vadd.f32 %v347, %v443
  %446 = vrot.lane.b32.xlu0 %v86, 40
  %v447 = vpop.permute.xlu0 %446
  %448 = vrot.lane.b32.xlu0 %v89, 40
  %v449 = vpop.permute.xlu0 %448
  %v453 = vsel %vm129, %v442, 0
  %v456 = vsel %vm129, %v443, 0
  %458 = vmatpush.msra.mxu0 0.0
  %459 = vmatpush.msra.mxu0 0.0
  %460 = vmatpush.msra.mxu0 0.0
  %461 = vmatpush.msra.mxu0 0.0
  %462 = vmatpush.msra.mxu0 0.0
  %463 = vmatpush.msra.mxu0 0.0
  %464 = vmatpush.msra.mxu0 0.0
  %465 = vmatpush.msra.mxu0 0.0
  %466 = vmatpush.msra.mxu0 0.0
  %467 = vmatpush.msra.mxu0 0.0
  %468 = vmatpush.msra.mxu0 0.0
  %469 = vmatpush.msra.mxu0 0.0
  %470 = vmatpush.msra.mxu0 0.0
  %471 = vmatpush.msra.mxu0 0.0
  %472 = vmatpush.msra.mxu0 %v449
  %473 = vmatpush.msra.mxu0 %v447
  %474 = vmatmul.f32.gmra.mxu0 %v453
  %v475 = vpop.f32.mrf.mxu0
  %v476 = vadd.f32 0.0, %v475
  %477 = vmatmul.f32.gmra.mxu0 %v456
  %v478 = vpop.f32.mrf.mxu0
  %v479 = vadd.f32 0.0, %v478
  %480 = vdwg.mxu0
  %v481 = vmul.f32 %v444, 0.25
  %v482 = vmul.f32 %v445, 0.25
  %483 = vst.msk [vmem:[%s15] sm:$0xff] %vm129, %v481
  %484 = vst.msk [vmem:[%s15 + $0x8] sm:$0xff] %vm129, %v482
  %487 = vrot.lane.b32.xlu0 %v280, 8
  %v488 = vpop.permute.xlu0 %487
  %489 = vrot.lane.b32.xlu0 %v283, 8
  %v490 = vpop.permute.xlu0 %489
  %495 = vrot.lane.b32.xlu0 %v378, 16
  %v496 = vpop.permute.xlu0 %495
  %497 = vrot.lane.b32.xlu0 %v381, 16
  %v498 = vpop.permute.xlu0 %497
  %503 = vrot.lane.b32.xlu0 %v476, 24
  %v504 = vpop.permute.xlu0 %503
  %505 = vrot.lane.b32.xlu0 %v479, 24
  %v506 = vpop.permute.xlu0 %505
  %v509 = vsel %vm97, %v182, %v488
  %v510 = vsel %vm97, %v185, %v490
  %v511 = vsel %vm129, %v509, %v496
  %v512 = vsel %vm129, %v510, %v498
  %vm513 = vcmask 195584
  %v514 = vsel %vm513, %v511, %v504
  %v515 = vsel %vm513, %v512, %v506
  %v516 = vld [vmem:[%s4] sm:$0xff]
  %v517 = vld [vmem:[%s4 + $0x8] sm:$0xff]
  %v518 = vld [vmem:[%s4 + $0x10] sm:$0xff]
  %v519 = vld [vmem:[%s4 + $0x18] sm:$0xff]
  %v520 = vld [vmem:[%s5] sm:$0x1]
  %v522 = vperm.slane %v520, 0
  %v525 = vsel %vm61, %v514, 0
  %v528 = vsel %vm61, %v515, 0
  %530 = vmatpush.msra.mxu0 0.0
  %531 = vmatpush.msra.mxu0 0.0
  %532 = vmatpush.msra.mxu0 0.0
  %533 = vmatpush.msra.mxu0 0.0
  %534 = vmatpush.msra.mxu0 0.0
  %535 = vmatpush.msra.mxu0 0.0
  %536 = vmatpush.msra.mxu0 0.0
  %537 = vmatpush.msra.mxu0 0.0
  %538 = vmatpush.msra.mxu0 0.0
  %539 = vmatpush.msra.mxu0 0.0
  %540 = vmatpush.msra.mxu0 0.0
  %541 = vmatpush.msra.mxu0 0.0
  %542 = vmatpush.msra.mxu0 %v519
  %543 = vmatpush.msra.mxu0 %v518
  %544 = vmatpush.msra.mxu0 %v517
  %545 = vmatpush.msra.mxu0 %v516
  %546 = vmatmul.f32.gmra.mxu0 %v525
  %v547 = vpop.f32.mrf.mxu0
  %v548 = vadd.f32 %v522, %v547
  %549 = vmatmul.f32.gmra.mxu0 %v528
  %v550 = vpop.f32.mrf.mxu0
  %v551 = vadd.f32 %v522, %v550
  %552 = vdwg.mxu0
  %v553 = vadd.f32 %v49, %v548
  %v554 = vadd.f32 %v50, %v551
  %v555 = vld [vmem:[%s10] sm:$0x1]
  %v556 = vld [vmem:[%s11] sm:$0x1]
  %v557 = vsel %vm61, %v553, 0.0
  %558 = vadd.xlane.f32.xlu0 %v557
  %v559 = vpop.xlane.xlu0 %558
  %v560 = vsel %vm61, %v554, 0.0
  %561 = vadd.xlane.f32.xlu0 %v560
  %v562 = vpop.xlane.xlu0 %561
  %v563 = vrcp.pop 32.0
  %v564 = vmul.f32 32.0, %v563
  %v565 = vsub.f32 1.0, %v564
  %v566 = vmul.f32 %v563, %v565
  %v567 = vadd.f32 %v563, %v566
  %vm568 = vweird.f32 %v563
  %v569 = vsel %vm568, %v563, %v567
  %v570 = vmul.f32 %v559, %v569
  %v571 = vmul.f32 %v562, %v569
  %v572 = vsub.f32 %v553, %v570
  %v573 = vsub.f32 %v554, %v571
  %v574 = vmul.f32 %v572, %v572
  %v575 = vmul.f32 %v573, %v573
  %v576 = vsel %vm61, %v574, 0.0
  %577 = vadd.xlane.f32.xlu0 %v576
  %v578 = vpop.xlane.xlu0 %577
  %v579 = vsel %vm61, %v575, 0.0
  %580 = vadd.xlane.f32.xlu0 %v579
  %v581 = vpop.xlane.xlu0 %580
  %v582 = vmul.f32 %v578, %v569
  %v583 = vmul.f32 %v581, %v569
  %v584 = vadd.f32 %v582, 1e-05
  %v585 = vadd.f32 %v583, 1e-05
  %v586 = vrsqrt.pop %v584
  %v587 = vmul.f32 %v586, %v584
  %v588 = vmul.f32 %v587, %v586
  %v589 = vmul.f32 0.5, %v588
  %v590 = vsub.f32 1.5, %v589
  %v591 = vmul.f32 %v586, %v590
  %vm592 = vweird.f32 %v584
  %vm593 = vweird.f32 %v586
  %vm594 = vmor %vm592, %vm593
  %v595 = vsel %vm594, %v586, %v591
  %v596 = vrsqrt.pop %v585
  %v597 = vmul.f32 %v596, %v585
  %v598 = vmul.f32 %v597, %v596
  %v599 = vmul.f32 0.5, %v598
  %v600 = vsub.f32 1.5, %v599
  %v601 = vmul.f32 %v596, %v600
  %vm602 = vweird.f32 %v585
  %vm603 = vweird.f32 %v596
  %vm604 = vmor %vm602, %vm603
  %v605 = vsel %vm604, %v596, %v601
  %v606 = vmul.f32 %v572, %v595
  %v607 = vmul.f32 %v573, %v605
  %v609 = vperm.slane %v555, 0
  %v611 = vmul.f32 %v606, %v609
  %v612 = vmul.f32 %v607, %v609
  %v614 = vperm.slane %v556, 0
  %v616 = vadd.f32 %v611, %v614
  %v617 = vadd.f32 %v612, %v614
  %v618 = vld [vmem:[%s6] sm:$0xff]
  %v619 = vld [vmem:[%s6 + $0x8] sm:$0xff]
  %v620 = vld [vmem:[%s6 + $0x10] sm:$0xff]
  %v621 = vld [vmem:[%s6 + $0x18] sm:$0xff]
  %v622 = vld [vmem:[%s7] sm:$0x1]
  %v624 = vperm.slane %v622, 0
  %v627 = vsel %vm61, %v616, 0
  %v630 = vsel %vm61, %v617, 0
  %632 = vmatpush.msra.mxu0 0.0
  %633 = vmatpush.msra.mxu0 0.0
  %634 = vmatpush.msra.mxu0 0.0
  %635 = vmatpush.msra.mxu0 0.0
  %636 = vmatpush.msra.mxu0 0.0
  %637 = vmatpush.msra.mxu0 0.0
  %638 = vmatpush.msra.mxu0 0.0
  %639 = vmatpush.msra.mxu0 0.0
  %640 = vmatpush.msra.mxu0 0.0
  %641 = vmatpush.msra.mxu0 0.0
  %642 = vmatpush.msra.mxu0 0.0
  %643 = vmatpush.msra.mxu0 0.0
  %644 = vmatpush.msra.mxu0 %v621
  %645 = vmatpush.msra.mxu0 %v620
  %646 = vmatpush.msra.mxu0 %v619
  %647 = vmatpush.msra.mxu0 %v618
  %648 = vmatmul.f32.gmra.mxu0 %v627
  %v649 = vpop.f32.mrf.mxu0
  %v650 = vadd.f32 %v624, %v649
  %651 = vmatmul.f32.gmra.mxu0 %v630
  %v652 = vpop.f32.mrf.mxu0
  %v653 = vadd.f32 %v624, %v652
  %654 = vdwg.mxu0
  %v655 = vmax.f32 %v650, 0.0
  %v656 = vmax.f32 %v653, 0.0
  %v657 = vld [vmem:[%s8] sm:$0xff]
  %v658 = vld [vmem:[%s8 + $0x8] sm:$0xff]
  %v659 = vld [vmem:[%s8 + $0x10] sm:$0xff]
  %v660 = vld [vmem:[%s8 + $0x18] sm:$0xff]
  %v661 = vld [vmem:[%s8 + $0x20] sm:$0xff]
  %v662 = vld [vmem:[%s8 + $0x28] sm:$0xff]
  %v663 = vld [vmem:[%s8 + $0x30] sm:$0xff]
  %v664 = vld [vmem:[%s8 + $0x38] sm:$0xff]
  %v665 = vld [vmem:[%s9] sm:$0x1]
  %v667 = vperm.slane %v665, 0
  %vm669 = vcmask 523264
  %v671 = vsel %vm669, %v655, 0
  %v674 = vsel %vm669, %v656, 0
  %676 = vmatpush.msra.mxu0 0.0
  %677 = vmatpush.msra.mxu0 0.0
  %678 = vmatpush.msra.mxu0 0.0
  %679 = vmatpush.msra.mxu0 0.0
  %680 = vmatpush.msra.mxu0 0.0
  %681 = vmatpush.msra.mxu0 0.0
  %682 = vmatpush.msra.mxu0 0.0
  %683 = vmatpush.msra.mxu0 0.0
  %684 = vmatpush.msra.mxu0 %v664
  %685 = vmatpush.msra.mxu0 %v663
  %686 = vmatpush.msra.mxu0 %v662
  %687 = vmatpush.msra.mxu0 %v661
  %688 = vmatpush.msra.mxu0 %v660
  %689 = vmatpush.msra.mxu0 %v659
  %690 = vmatpush.msra.mxu0 %v658
  %691 = vmatpush.msra.mxu0 %v657
  %692 = vmatmul.f32.gmra.mxu0 %v671
  %v693 = vpop.f32.mrf.mxu0
  %v694 = vadd.f32 %v667, %v693
  %695 = vmatmul.f32.gmra.mxu0 %v674
  %v696 = vpop.f32.mrf.mxu0
  %v697 = vadd.f32 %v667, %v696
  %698 = vdwg.mxu0
  %v699 = vadd.f32 %v616, %v694
  %v700 = vadd.f32 %v617, %v697
  %v701 = vld [vmem:[%s12] sm:$0x1]
  %v702 = vld [vmem:[%s13] sm:$0x1]
  %v703 = vsel %vm61, %v699, 0.0
  %704 = vadd.xlane.f32.xlu0 %v703
  %v705 = vpop.xlane.xlu0 %704
  %v706 = vsel %vm61, %v700, 0.0
  %707 = vadd.xlane.f32.xlu0 %v706
  %v708 = vpop.xlane.xlu0 %707
  %v709 = vmul.f32 %v705, %v569
  %v710 = vmul.f32 %v708, %v569
  %v711 = vsub.f32 %v699, %v709
  %v712 = vsub.f32 %v700, %v710
  %v713 = vmul.f32 %v711, %v711
  %v714 = vmul.f32 %v712, %v712
  %v715 = vsel %vm61, %v713, 0.0
  %716 = vadd.xlane.f32.xlu0 %v715
  %v717 = vpop.xlane.xlu0 %716
  %v718 = vsel %vm61, %v714, 0.0
  %719 = vadd.xlane.f32.xlu0 %v718
  %v720 = vpop.xlane.xlu0 %719
  %v721 = vmul.f32 %v717, %v569
  %v722 = vmul.f32 %v720, %v569
  %v723 = vadd.f32 %v721, 1e-05
  %v724 = vadd.f32 %v722, 1e-05
  %v725 = vrsqrt.pop %v723
  %v726 = vmul.f32 %v725, %v723
  %v727 = vmul.f32 %v726, %v725
  %v728 = vmul.f32 0.5, %v727
  %v729 = vsub.f32 1.5, %v728
  %v730 = vmul.f32 %v725, %v729
  %vm731 = vweird.f32 %v723
  %vm732 = vweird.f32 %v725
  %vm733 = vmor %vm731, %vm732
  %v734 = vsel %vm733, %v725, %v730
  %v735 = vrsqrt.pop %v724
  %v736 = vmul.f32 %v735, %v724
  %v737 = vmul.f32 %v736, %v735
  %v738 = vmul.f32 0.5, %v737
  %v739 = vsub.f32 1.5, %v738
  %v740 = vmul.f32 %v735, %v739
  %vm741 = vweird.f32 %v724
  %vm742 = vweird.f32 %v735
  %vm743 = vmor %vm741, %vm742
  %v744 = vsel %vm743, %v735, %v740
  %v745 = vmul.f32 %v711, %v734
  %v746 = vmul.f32 %v712, %v744
  %v748 = vperm.slane %v701, 0
  %v750 = vmul.f32 %v745, %v748
  %v751 = vmul.f32 %v746, %v748
  %v753 = vperm.slane %v702, 0
  %v755 = vadd.f32 %v750, %v753
  %v756 = vadd.f32 %v751, %v753
  %s757 = scalar_lea.vmem %s2, 32
  %v758 = vld [vmem:[%s757] sm:$0xff]
  %v759 = vld [vmem:[%s757 + $0x8] sm:$0xff]
  %v760 = vld [vmem:[%s757 + $0x10] sm:$0xff]
  %v761 = vld [vmem:[%s757 + $0x18] sm:$0xff]
  %s762 = scalar_lea.vmem %s3, 1
  %v763 = vld [vmem:[%s762] sm:$0x1]
  %v765 = vperm.slane %v763, 0
  %v768 = vsel %vm61, %v755, 0
  %v771 = vsel %vm61, %v756, 0
  %773 = vmatpush.msra.mxu0 0.0
  %774 = vmatpush.msra.mxu0 0.0
  %775 = vmatpush.msra.mxu0 0.0
  %776 = vmatpush.msra.mxu0 0.0
  %777 = vmatpush.msra.mxu0 0.0
  %778 = vmatpush.msra.mxu0 0.0
  %779 = vmatpush.msra.mxu0 0.0
  %780 = vmatpush.msra.mxu0 0.0
  %781 = vmatpush.msra.mxu0 0.0
  %782 = vmatpush.msra.mxu0 0.0
  %783 = vmatpush.msra.mxu0 0.0
  %784 = vmatpush.msra.mxu0 0.0
  %785 = vmatpush.msra.mxu0 %v761
  %786 = vmatpush.msra.mxu0 %v760
  %787 = vmatpush.msra.mxu0 %v759
  %788 = vmatpush.msra.mxu0 %v758
  %789 = vmatmul.f32.gmra.mxu0 %v768
  %v790 = vpop.f32.mrf.mxu0
  %v791 = vadd.f32 %v765, %v790
  %792 = vmatmul.f32.gmra.mxu0 %v771
  %v793 = vpop.f32.mrf.mxu0
  %v794 = vadd.f32 %v765, %v793
  %795 = vdwg.mxu0
  %798 = vrot.lane.b32.xlu0 %v791, 96
  %v799 = vpop.permute.xlu0 %798
  %800 = vrot.lane.b32.xlu0 %v794, 96
  %v801 = vpop.permute.xlu0 %800
  %v802 = vsel %vm97, %v791, 0
  %v804 = vsel %vm97, %v794, 0
  %v806 = vsel %vm97, %v799, 0
  %v808 = vsel %vm97, %v801, 0
  %810 = vmatpush.xpose.msra.mxu0 0.0
  %811 = vmatpush.xpose.msra.mxu0 0.0
  %812 = vmatpush.xpose.msra.mxu0 0.0
  %813 = vmatpush.xpose.msra.mxu0 0.0
  %814 = vmatpush.xpose.msra.mxu0 0.0
  %815 = vmatpush.xpose.msra.mxu0 0.0
  %816 = vmatpush.xpose.msra.mxu0 0.0
  %817 = vmatpush.xpose.msra.mxu0 0.0
  %818 = vmatpush.xpose.msra.mxu0 0.0
  %819 = vmatpush.xpose.msra.mxu0 0.0
  %820 = vmatpush.xpose.msra.mxu0 0.0
  %821 = vmatpush.xpose.msra.mxu0 0.0
  %822 = vmatpush.xpose.msra.mxu0 0.0
  %823 = vmatpush.xpose.msra.mxu0 0.0
  %824 = vmatpush.xpose.msra.mxu0 %v808
  %825 = vmatpush.xpose.msra.mxu0 %v806
  %826 = vmatmul.f32.gmra.mxu0 %v802
  %v827 = vpop.f32.mrf.mxu0
  %v828 = vadd.f32 %v51, %v827
  %829 = vmatmul.f32.gmra.mxu0 %v804
  %v830 = vpop.f32.mrf.mxu0
  %v831 = vadd.f32 %v52, %v830
  %832 = vdwg.mxu0
  %v833 = vsel %vm129, %v828, -inf
  %834 = vmax.xlane.f32.xlu0 %v833
  %v835 = vpop.xlane.xlu0 %834
  %v836 = vsel %vm129, %v831, -inf
  %837 = vmax.xlane.f32.xlu0 %v836
  %v838 = vpop.xlane.xlu0 %837
  %v839 = vsub.f32 %v828, %v835
  %v840 = vsub.f32 %v831, %v838
  %v841 = vmul.f32 %v839, 1.442695
  %v842 = vpow.pop %v841
  %v843 = vmul.f32 %v840, 1.442695
  %v844 = vpow.pop %v843
  %v845 = vsel %vm129, %v842, 0.0
  %846 = vadd.xlane.f32.xlu0 %v845
  %v847 = vpop.xlane.xlu0 %846
  %v848 = vsel %vm129, %v844, 0.0
  %849 = vadd.xlane.f32.xlu0 %v848
  %v850 = vpop.xlane.xlu0 %849
  %v851 = vrcp.pop %v847
  %v852 = vrcp.pop %v850
  %v853 = vmul.f32 %v842, %v851
  %v854 = vmul.f32 %v844, %v852
  %855 = vrot.lane.b32.xlu0 %v791, 64
  %v856 = vpop.permute.xlu0 %855
  %857 = vrot.lane.b32.xlu0 %v794, 64
  %v858 = vpop.permute.xlu0 %857
  %v862 = vsel %vm129, %v853, 0
  %v865 = vsel %vm129, %v854, 0
  %867 = vmatpush.msra.mxu0 0.0
  %868 = vmatpush.msra.mxu0 0.0
  %869 = vmatpush.msra.mxu0 0.0
  %870 = vmatpush.msra.mxu0 0.0
  %871 = vmatpush.msra.mxu0 0.0
  %872 = vmatpush.msra.mxu0 0.0
  %873 = vmatpush.msra.mxu0 0.0
  %874 = vmatpush.msra.mxu0 0.0
  %875 = vmatpush.msra.mxu0 0.0
  %876 = vmatpush.msra.mxu0 0.0
  %877 = vmatpush.msra.mxu0 0.0
  %878 = vmatpush.msra.mxu0 0.0
  %879 = vmatpush.msra.mxu0 0.0
  %880 = vmatpush.msra.mxu0 0.0
  %881 = vmatpush.msra.mxu0 %v858
  %882 = vmatpush.msra.mxu0 %v856
  %883 = vmatmul.f32.gmra.mxu0 %v862
  %v884 = vpop.f32.mrf.mxu0
  %v885 = vadd.f32 0.0, %v884
  %886 = vmatmul.f32.gmra.mxu0 %v865
  %v887 = vpop.f32.mrf.mxu0
  %v888 = vadd.f32 0.0, %v887
  %889 = vdwg.mxu0
  %890 = vrot.lane.b32.xlu0 %v791, 120
  %v891 = vpop.permute.xlu0 %890
  %892 = vrot.lane.b32.xlu0 %v794, 120
  %v893 = vpop.permute.xlu0 %892
  %894 = vrot.lane.b32.xlu0 %v791, 88
  %v895 = vpop.permute.xlu0 %894
  %896 = vrot.lane.b32.xlu0 %v794, 88
  %v897 = vpop.permute.xlu0 %896
  %v898 = vsel %vm97, %v891, 0
  %v900 = vsel %vm97, %v893, 0
  %v902 = vsel %vm97, %v895, 0
  %v904 = vsel %vm97, %v897, 0
  %906 = vmatpush.xpose.msra.mxu0 0.0
  %907 = vmatpush.xpose.msra.mxu0 0.0
  %908 = vmatpush.xpose.msra.mxu0 0.0
  %909 = vmatpush.xpose.msra.mxu0 0.0
  %910 = vmatpush.xpose.msra.mxu0 0.0
  %911 = vmatpush.xpose.msra.mxu0 0.0
  %912 = vmatpush.xpose.msra.mxu0 0.0
  %913 = vmatpush.xpose.msra.mxu0 0.0
  %914 = vmatpush.xpose.msra.mxu0 0.0
  %915 = vmatpush.xpose.msra.mxu0 0.0
  %916 = vmatpush.xpose.msra.mxu0 0.0
  %917 = vmatpush.xpose.msra.mxu0 0.0
  %918 = vmatpush.xpose.msra.mxu0 0.0
  %919 = vmatpush.xpose.msra.mxu0 0.0
  %920 = vmatpush.xpose.msra.mxu0 %v904
  %921 = vmatpush.xpose.msra.mxu0 %v902
  %922 = vmatmul.f32.gmra.mxu0 %v898
  %v923 = vpop.f32.mrf.mxu0
  %v924 = vadd.f32 %v51, %v923
  %925 = vmatmul.f32.gmra.mxu0 %v900
  %v926 = vpop.f32.mrf.mxu0
  %v927 = vadd.f32 %v52, %v926
  %928 = vdwg.mxu0
  %v929 = vsel %vm129, %v924, -inf
  %930 = vmax.xlane.f32.xlu0 %v929
  %v931 = vpop.xlane.xlu0 %930
  %v932 = vsel %vm129, %v927, -inf
  %933 = vmax.xlane.f32.xlu0 %v932
  %v934 = vpop.xlane.xlu0 %933
  %v935 = vsub.f32 %v924, %v931
  %v936 = vsub.f32 %v927, %v934
  %v937 = vmul.f32 %v935, 1.442695
  %v938 = vpow.pop %v937
  %v939 = vmul.f32 %v936, 1.442695
  %v940 = vpow.pop %v939
  %v941 = vsel %vm129, %v938, 0.0
  %942 = vadd.xlane.f32.xlu0 %v941
  %v943 = vpop.xlane.xlu0 %942
  %v944 = vsel %vm129, %v940, 0.0
  %945 = vadd.xlane.f32.xlu0 %v944
  %v946 = vpop.xlane.xlu0 %945
  %v947 = vrcp.pop %v943
  %v948 = vrcp.pop %v946
  %v949 = vmul.f32 %v938, %v947
  %v950 = vmul.f32 %v940, %v948
  %v951 = vadd.f32 %v853, %v949
  %v952 = vadd.f32 %v854, %v950
  %953 = vrot.lane.b32.xlu0 %v791, 56
  %v954 = vpop.permute.xlu0 %953
  %955 = vrot.lane.b32.xlu0 %v794, 56
  %v956 = vpop.permute.xlu0 %955
  %v960 = vsel %vm129, %v949, 0
  %v963 = vsel %vm129, %v950, 0
  %965 = vmatpush.msra.mxu0 0.0
  %966 = vmatpush.msra.mxu0 0.0
  %967 = vmatpush.msra.mxu0 0.0
  %968 = vmatpush.msra.mxu0 0.0
  %969 = vmatpush.msra.mxu0 0.0
  %970 = vmatpush.msra.mxu0 0.0
  %971 = vmatpush.msra.mxu0 0.0
  %972 = vmatpush.msra.mxu0 0.0
  %973 = vmatpush.msra.mxu0 0.0
  %974 = vmatpush.msra.mxu0 0.0
  %975 = vmatpush.msra.mxu0 0.0
  %976 = vmatpush.msra.mxu0 0.0
  %977 = vmatpush.msra.mxu0 0.0
  %978 = vmatpush.msra.mxu0 0.0
  %979 = vmatpush.msra.mxu0 %v956
  %980 = vmatpush.msra.mxu0 %v954
  %981 = vmatmul.f32.gmra.mxu0 %v960
  %v982 = vpop.f32.mrf.mxu0
  %v983 = vadd.f32 0.0, %v982
  %984 = vmatmul.f32.gmra.mxu0 %v963
  %v985 = vpop.f32.mrf.mxu0
  %v986 = vadd.f32 0.0, %v985
  %987 = vdwg.mxu0
  %988 = vrot.lane.b32.xlu0 %v791, 112
  %v989 = vpop.permute.xlu0 %988
  %990 = vrot.lane.b32.xlu0 %v794, 112
  %v991 = vpop.permute.xlu0 %990
  %992 = vrot.lane.b32.xlu0 %v791, 80
  %v993 = vpop.permute.xlu0 %992
  %994 = vrot.lane.b32.xlu0 %v794, 80
  %v995 = vpop.permute.xlu0 %994
  %v996 = vsel %vm97, %v989, 0
  %v998 = vsel %vm97, %v991, 0
  %v1000 = vsel %vm97, %v993, 0
  %v1002 = vsel %vm97, %v995, 0
  %1004 = vmatpush.xpose.msra.mxu0 0.0
  %1005 = vmatpush.xpose.msra.mxu0 0.0
  %1006 = vmatpush.xpose.msra.mxu0 0.0
  %1007 = vmatpush.xpose.msra.mxu0 0.0
  %1008 = vmatpush.xpose.msra.mxu0 0.0
  %1009 = vmatpush.xpose.msra.mxu0 0.0
  %1010 = vmatpush.xpose.msra.mxu0 0.0
  %1011 = vmatpush.xpose.msra.mxu0 0.0
  %1012 = vmatpush.xpose.msra.mxu0 0.0
  %1013 = vmatpush.xpose.msra.mxu0 0.0
  %1014 = vmatpush.xpose.msra.mxu0 0.0
  %1015 = vmatpush.xpose.msra.mxu0 0.0
  %1016 = vmatpush.xpose.msra.mxu0 0.0
  %1017 = vmatpush.xpose.msra.mxu0 0.0
  %1018 = vmatpush.xpose.msra.mxu0 %v1002
  %1019 = vmatpush.xpose.msra.mxu0 %v1000
  %1020 = vmatmul.f32.gmra.mxu0 %v996
  %v1021 = vpop.f32.mrf.mxu0
  %v1022 = vadd.f32 %v51, %v1021
  %1023 = vmatmul.f32.gmra.mxu0 %v998
  %v1024 = vpop.f32.mrf.mxu0
  %v1025 = vadd.f32 %v52, %v1024
  %1026 = vdwg.mxu0
  %v1027 = vsel %vm129, %v1022, -inf
  %1028 = vmax.xlane.f32.xlu0 %v1027
  %v1029 = vpop.xlane.xlu0 %1028
  %v1030 = vsel %vm129, %v1025, -inf
  %1031 = vmax.xlane.f32.xlu0 %v1030
  %v1032 = vpop.xlane.xlu0 %1031
  %v1033 = vsub.f32 %v1022, %v1029
  %v1034 = vsub.f32 %v1025, %v1032
  %v1035 = vmul.f32 %v1033, 1.442695
  %v1036 = vpow.pop %v1035
  %v1037 = vmul.f32 %v1034, 1.442695
  %v1038 = vpow.pop %v1037
  %v1039 = vsel %vm129, %v1036, 0.0
  %1040 = vadd.xlane.f32.xlu0 %v1039
  %v1041 = vpop.xlane.xlu0 %1040
  %v1042 = vsel %vm129, %v1038, 0.0
  %1043 = vadd.xlane.f32.xlu0 %v1042
  %v1044 = vpop.xlane.xlu0 %1043
  %v1045 = vrcp.pop %v1041
  %v1046 = vrcp.pop %v1044
  %v1047 = vmul.f32 %v1036, %v1045
  %v1048 = vmul.f32 %v1038, %v1046
  %v1049 = vadd.f32 %v951, %v1047
  %v1050 = vadd.f32 %v952, %v1048
  %1051 = vrot.lane.b32.xlu0 %v791, 48
  %v1052 = vpop.permute.xlu0 %1051
  %1053 = vrot.lane.b32.xlu0 %v794, 48
  %v1054 = vpop.permute.xlu0 %1053
  %v1058 = vsel %vm129, %v1047, 0
  %v1061 = vsel %vm129, %v1048, 0
  %1063 = vmatpush.msra.mxu0 0.0
  %1064 = vmatpush.msra.mxu0 0.0
  %1065 = vmatpush.msra.mxu0 0.0
  %1066 = vmatpush.msra.mxu0 0.0
  %1067 = vmatpush.msra.mxu0 0.0
  %1068 = vmatpush.msra.mxu0 0.0
  %1069 = vmatpush.msra.mxu0 0.0
  %1070 = vmatpush.msra.mxu0 0.0
  %1071 = vmatpush.msra.mxu0 0.0
  %1072 = vmatpush.msra.mxu0 0.0
  %1073 = vmatpush.msra.mxu0 0.0
  %1074 = vmatpush.msra.mxu0 0.0
  %1075 = vmatpush.msra.mxu0 0.0
  %1076 = vmatpush.msra.mxu0 0.0
  %1077 = vmatpush.msra.mxu0 %v1054
  %1078 = vmatpush.msra.mxu0 %v1052
  %1079 = vmatmul.f32.gmra.mxu0 %v1058
  %v1080 = vpop.f32.mrf.mxu0
  %v1081 = vadd.f32 0.0, %v1080
  %1082 = vmatmul.f32.gmra.mxu0 %v1061
  %v1083 = vpop.f32.mrf.mxu0
  %v1084 = vadd.f32 0.0, %v1083
  %1085 = vdwg.mxu0
  %1086 = vrot.lane.b32.xlu0 %v791, 104
  %v1087 = vpop.permute.xlu0 %1086
  %1088 = vrot.lane.b32.xlu0 %v794, 104
  %v1089 = vpop.permute.xlu0 %1088
  %1090 = vrot.lane.b32.xlu0 %v791, 72
  %v1091 = vpop.permute.xlu0 %1090
  %1092 = vrot.lane.b32.xlu0 %v794, 72
  %v1093 = vpop.permute.xlu0 %1092
  %v1094 = vsel %vm97, %v1087, 0
  %v1096 = vsel %vm97, %v1089, 0
  %v1098 = vsel %vm97, %v1091, 0
  %v1100 = vsel %vm97, %v1093, 0
  %1102 = vmatpush.xpose.msra.mxu0 0.0
  %1103 = vmatpush.xpose.msra.mxu0 0.0
  %1104 = vmatpush.xpose.msra.mxu0 0.0
  %1105 = vmatpush.xpose.msra.mxu0 0.0
  %1106 = vmatpush.xpose.msra.mxu0 0.0
  %1107 = vmatpush.xpose.msra.mxu0 0.0
  %1108 = vmatpush.xpose.msra.mxu0 0.0
  %1109 = vmatpush.xpose.msra.mxu0 0.0
  %1110 = vmatpush.xpose.msra.mxu0 0.0
  %1111 = vmatpush.xpose.msra.mxu0 0.0
  %1112 = vmatpush.xpose.msra.mxu0 0.0
  %1113 = vmatpush.xpose.msra.mxu0 0.0
  %1114 = vmatpush.xpose.msra.mxu0 0.0
  %1115 = vmatpush.xpose.msra.mxu0 0.0
  %1116 = vmatpush.xpose.msra.mxu0 %v1100
  %1117 = vmatpush.xpose.msra.mxu0 %v1098
  %1118 = vmatmul.f32.gmra.mxu0 %v1094
  %v1119 = vpop.f32.mrf.mxu0
  %v1120 = vadd.f32 %v51, %v1119
  %1121 = vmatmul.f32.gmra.mxu0 %v1096
  %v1122 = vpop.f32.mrf.mxu0
  %v1123 = vadd.f32 %v52, %v1122
  %1124 = vdwg.mxu0
  %v1125 = vsel %vm129, %v1120, -inf
  %1126 = vmax.xlane.f32.xlu0 %v1125
  %v1127 = vpop.xlane.xlu0 %1126
  %v1128 = vsel %vm129, %v1123, -inf
  %1129 = vmax.xlane.f32.xlu0 %v1128
  %v1130 = vpop.xlane.xlu0 %1129
  %v1131 = vsub.f32 %v1120, %v1127
  %v1132 = vsub.f32 %v1123, %v1130
  %v1133 = vmul.f32 %v1131, 1.442695
  %v1134 = vpow.pop %v1133
  %v1135 = vmul.f32 %v1132, 1.442695
  %v1136 = vpow.pop %v1135
  %v1137 = vsel %vm129, %v1134, 0.0
  %1138 = vadd.xlane.f32.xlu0 %v1137
  %v1139 = vpop.xlane.xlu0 %1138
  %v1140 = vsel %vm129, %v1136, 0.0
  %1141 = vadd.xlane.f32.xlu0 %v1140
  %v1142 = vpop.xlane.xlu0 %1141
  %v1143 = vrcp.pop %v1139
  %v1144 = vrcp.pop %v1142
  %v1145 = vmul.f32 %v1134, %v1143
  %v1146 = vmul.f32 %v1136, %v1144
  %v1147 = vadd.f32 %v1049, %v1145
  %v1148 = vadd.f32 %v1050, %v1146
  %1149 = vrot.lane.b32.xlu0 %v791, 40
  %v1150 = vpop.permute.xlu0 %1149
  %1151 = vrot.lane.b32.xlu0 %v794, 40
  %v1152 = vpop.permute.xlu0 %1151
  %v1156 = vsel %vm129, %v1145, 0
  %v1159 = vsel %vm129, %v1146, 0
  %1161 = vmatpush.msra.mxu0 0.0
  %1162 = vmatpush.msra.mxu0 0.0
  %1163 = vmatpush.msra.mxu0 0.0
  %1164 = vmatpush.msra.mxu0 0.0
  %1165 = vmatpush.msra.mxu0 0.0
  %1166 = vmatpush.msra.mxu0 0.0
  %1167 = vmatpush.msra.mxu0 0.0
  %1168 = vmatpush.msra.mxu0 0.0
  %1169 = vmatpush.msra.mxu0 0.0
  %1170 = vmatpush.msra.mxu0 0.0
  %1171 = vmatpush.msra.mxu0 0.0
  %1172 = vmatpush.msra.mxu0 0.0
  %1173 = vmatpush.msra.mxu0 0.0
  %1174 = vmatpush.msra.mxu0 0.0
  %1175 = vmatpush.msra.mxu0 %v1152
  %1176 = vmatpush.msra.mxu0 %v1150
  %1177 = vmatmul.f32.gmra.mxu0 %v1156
  %v1178 = vpop.f32.mrf.mxu0
  %v1179 = vadd.f32 0.0, %v1178
  %1180 = vmatmul.f32.gmra.mxu0 %v1159
  %v1181 = vpop.f32.mrf.mxu0
  %v1182 = vadd.f32 0.0, %v1181
  %1183 = vdwg.mxu0
  %v1184 = vmul.f32 %v1147, 0.25
  %v1185 = vmul.f32 %v1148, 0.25
  %s1186 = scalar_lea.vmem %s15, 16
  %1187 = vst.msk [vmem:[%s1186] sm:$0xff] %vm129, %v1184
  %1188 = vst.msk [vmem:[%s1186 + $0x8] sm:$0xff] %vm129, %v1185
  %1191 = vrot.lane.b32.xlu0 %v983, 8
  %v1192 = vpop.permute.xlu0 %1191
  %1193 = vrot.lane.b32.xlu0 %v986, 8
  %v1194 = vpop.permute.xlu0 %1193
  %1199 = vrot.lane.b32.xlu0 %v1081, 16
  %v1200 = vpop.permute.xlu0 %1199
  %1201 = vrot.lane.b32.xlu0 %v1084, 16
  %v1202 = vpop.permute.xlu0 %1201
  %1207 = vrot.lane.b32.xlu0 %v1179, 24
  %v1208 = vpop.permute.xlu0 %1207
  %1209 = vrot.lane.b32.xlu0 %v1182, 24
  %v1210 = vpop.permute.xlu0 %1209
  %v1213 = vsel %vm97, %v885, %v1192
  %v1214 = vsel %vm97, %v888, %v1194
  %v1215 = vsel %vm129, %v1213, %v1200
  %v1216 = vsel %vm129, %v1214, %v1202
  %v1217 = vsel %vm513, %v1215, %v1208
  %v1218 = vsel %vm513, %v1216, %v1210
  %s1219 = scalar_lea.vmem %s4, 32
  %v1220 = vld [vmem:[%s1219] sm:$0xff]
  %v1221 = vld [vmem:[%s1219 + $0x8] sm:$0xff]
  %v1222 = vld [vmem:[%s1219 + $0x10] sm:$0xff]
  %v1223 = vld [vmem:[%s1219 + $0x18] sm:$0xff]
  %s1224 = scalar_lea.vmem %s5, 1
  %v1225 = vld [vmem:[%s1224] sm:$0x1]
  %v1227 = vperm.slane %v1225, 0
  %v1230 = vsel %vm61, %v1217, 0
  %v1233 = vsel %vm61, %v1218, 0
  %1235 = vmatpush.msra.mxu0 0.0
  %1236 = vmatpush.msra.mxu0 0.0
  %1237 = vmatpush.msra.mxu0 0.0
  %1238 = vmatpush.msra.mxu0 0.0
  %1239 = vmatpush.msra.mxu0 0.0
  %1240 = vmatpush.msra.mxu0 0.0
  %1241 = vmatpush.msra.mxu0 0.0
  %1242 = vmatpush.msra.mxu0 0.0
  %1243 = vmatpush.msra.mxu0 0.0
  %1244 = vmatpush.msra.mxu0 0.0
  %1245 = vmatpush.msra.mxu0 0.0
  %1246 = vmatpush.msra.mxu0 0.0
  %1247 = vmatpush.msra.mxu0 %v1223
  %1248 = vmatpush.msra.mxu0 %v1222
  %1249 = vmatpush.msra.mxu0 %v1221
  %1250 = vmatpush.msra.mxu0 %v1220
  %1251 = vmatmul.f32.gmra.mxu0 %v1230
  %v1252 = vpop.f32.mrf.mxu0
  %v1253 = vadd.f32 %v1227, %v1252
  %1254 = vmatmul.f32.gmra.mxu0 %v1233
  %v1255 = vpop.f32.mrf.mxu0
  %v1256 = vadd.f32 %v1227, %v1255
  %1257 = vdwg.mxu0
  %v1258 = vadd.f32 %v755, %v1253
  %v1259 = vadd.f32 %v756, %v1256
  %s1260 = scalar_lea.vmem %s10, 1
  %v1261 = vld [vmem:[%s1260] sm:$0x1]
  %s1262 = scalar_lea.vmem %s11, 1
  %v1263 = vld [vmem:[%s1262] sm:$0x1]
  %v1264 = vsel %vm61, %v1258, 0.0
  %1265 = vadd.xlane.f32.xlu0 %v1264
  %v1266 = vpop.xlane.xlu0 %1265
  %v1267 = vsel %vm61, %v1259, 0.0
  %1268 = vadd.xlane.f32.xlu0 %v1267
  %v1269 = vpop.xlane.xlu0 %1268
  %v1270 = vmul.f32 %v1266, %v569
  %v1271 = vmul.f32 %v1269, %v569
  %v1272 = vsub.f32 %v1258, %v1270
  %v1273 = vsub.f32 %v1259, %v1271
  %v1274 = vmul.f32 %v1272, %v1272
  %v1275 = vmul.f32 %v1273, %v1273
  %v1276 = vsel %vm61, %v1274, 0.0
  %1277 = vadd.xlane.f32.xlu0 %v1276
  %v1278 = vpop.xlane.xlu0 %1277
  %v1279 = vsel %vm61, %v1275, 0.0
  %1280 = vadd.xlane.f32.xlu0 %v1279
  %v1281 = vpop.xlane.xlu0 %1280
  %v1282 = vmul.f32 %v1278, %v569
  %v1283 = vmul.f32 %v1281, %v569
  %v1284 = vadd.f32 %v1282, 1e-05
  %v1285 = vadd.f32 %v1283, 1e-05
  %v1286 = vrsqrt.pop %v1284
  %v1287 = vmul.f32 %v1286, %v1284
  %v1288 = vmul.f32 %v1287, %v1286
  %v1289 = vmul.f32 0.5, %v1288
  %v1290 = vsub.f32 1.5, %v1289
  %v1291 = vmul.f32 %v1286, %v1290
  %vm1292 = vweird.f32 %v1284
  %vm1293 = vweird.f32 %v1286
  %vm1294 = vmor %vm1292, %vm1293
  %v1295 = vsel %vm1294, %v1286, %v1291
  %v1296 = vrsqrt.pop %v1285
  %v1297 = vmul.f32 %v1296, %v1285
  %v1298 = vmul.f32 %v1297, %v1296
  %v1299 = vmul.f32 0.5, %v1298
  %v1300 = vsub.f32 1.5, %v1299
  %v1301 = vmul.f32 %v1296, %v1300
  %vm1302 = vweird.f32 %v1285
  %vm1303 = vweird.f32 %v1296
  %vm1304 = vmor %vm1302, %vm1303
  %v1305 = vsel %vm1304, %v1296, %v1301
  %v1306 = vmul.f32 %v1272, %v1295
  %v1307 = vmul.f32 %v1273, %v1305
  %v1309 = vperm.slane %v1261, 0
  %v1311 = vmul.f32 %v1306, %v1309
  %v1312 = vmul.f32 %v1307, %v1309
  %v1314 = vperm.slane %v1263, 0
  %v1316 = vadd.f32 %v1311, %v1314
  %v1317 = vadd.f32 %v1312, %v1314
  %s1318 = scalar_lea.vmem %s6, 32
  %v1319 = vld [vmem:[%s1318] sm:$0xff]
  %v1320 = vld [vmem:[%s1318 + $0x8] sm:$0xff]
  %v1321 = vld [vmem:[%s1318 + $0x10] sm:$0xff]
  %v1322 = vld [vmem:[%s1318 + $0x18] sm:$0xff]
  %s1323 = scalar_lea.vmem %s7, 1
  %v1324 = vld [vmem:[%s1323] sm:$0x1]
  %v1326 = vperm.slane %v1324, 0
  %v1329 = vsel %vm61, %v1316, 0
  %v1332 = vsel %vm61, %v1317, 0
  %1334 = vmatpush.msra.mxu0 0.0
  %1335 = vmatpush.msra.mxu0 0.0
  %1336 = vmatpush.msra.mxu0 0.0
  %1337 = vmatpush.msra.mxu0 0.0
  %1338 = vmatpush.msra.mxu0 0.0
  %1339 = vmatpush.msra.mxu0 0.0
  %1340 = vmatpush.msra.mxu0 0.0
  %1341 = vmatpush.msra.mxu0 0.0
  %1342 = vmatpush.msra.mxu0 0.0
  %1343 = vmatpush.msra.mxu0 0.0
  %1344 = vmatpush.msra.mxu0 0.0
  %1345 = vmatpush.msra.mxu0 0.0
  %1346 = vmatpush.msra.mxu0 %v1322
  %1347 = vmatpush.msra.mxu0 %v1321
  %1348 = vmatpush.msra.mxu0 %v1320
  %1349 = vmatpush.msra.mxu0 %v1319
  %1350 = vmatmul.f32.gmra.mxu0 %v1329
  %v1351 = vpop.f32.mrf.mxu0
  %v1352 = vadd.f32 %v1326, %v1351
  %1353 = vmatmul.f32.gmra.mxu0 %v1332
  %v1354 = vpop.f32.mrf.mxu0
  %v1355 = vadd.f32 %v1326, %v1354
  %1356 = vdwg.mxu0
  %v1357 = vmax.f32 %v1352, 0.0
  %v1358 = vmax.f32 %v1355, 0.0
  %s1359 = scalar_lea.vmem %s8, 64
  %v1360 = vld [vmem:[%s1359] sm:$0xff]
  %v1361 = vld [vmem:[%s1359 + $0x8] sm:$0xff]
  %v1362 = vld [vmem:[%s1359 + $0x10] sm:$0xff]
  %v1363 = vld [vmem:[%s1359 + $0x18] sm:$0xff]
  %v1364 = vld [vmem:[%s1359 + $0x20] sm:$0xff]
  %v1365 = vld [vmem:[%s1359 + $0x28] sm:$0xff]
  %v1366 = vld [vmem:[%s1359 + $0x30] sm:$0xff]
  %v1367 = vld [vmem:[%s1359 + $0x38] sm:$0xff]
  %s1368 = scalar_lea.vmem %s9, 1
  %v1369 = vld [vmem:[%s1368] sm:$0x1]
  %v1371 = vperm.slane %v1369, 0
  %v1374 = vsel %vm669, %v1357, 0
  %v1377 = vsel %vm669, %v1358, 0
  %1379 = vmatpush.msra.mxu0 0.0
  %1380 = vmatpush.msra.mxu0 0.0
  %1381 = vmatpush.msra.mxu0 0.0
  %1382 = vmatpush.msra.mxu0 0.0
  %1383 = vmatpush.msra.mxu0 0.0
  %1384 = vmatpush.msra.mxu0 0.0
  %1385 = vmatpush.msra.mxu0 0.0
  %1386 = vmatpush.msra.mxu0 0.0
  %1387 = vmatpush.msra.mxu0 %v1367
  %1388 = vmatpush.msra.mxu0 %v1366
  %1389 = vmatpush.msra.mxu0 %v1365
  %1390 = vmatpush.msra.mxu0 %v1364
  %1391 = vmatpush.msra.mxu0 %v1363
  %1392 = vmatpush.msra.mxu0 %v1362
  %1393 = vmatpush.msra.mxu0 %v1361
  %1394 = vmatpush.msra.mxu0 %v1360
  %1395 = vmatmul.f32.gmra.mxu0 %v1374
  %v1396 = vpop.f32.mrf.mxu0
  %v1397 = vadd.f32 %v1371, %v1396
  %1398 = vmatmul.f32.gmra.mxu0 %v1377
  %v1399 = vpop.f32.mrf.mxu0
  %v1400 = vadd.f32 %v1371, %v1399
  %1401 = vdwg.mxu0
  %v1402 = vadd.f32 %v1316, %v1397
  %v1403 = vadd.f32 %v1317, %v1400
  %s1404 = scalar_lea.vmem %s12, 1
  %v1405 = vld [vmem:[%s1404] sm:$0x1]
  %s1406 = scalar_lea.vmem %s13, 1
  %v1407 = vld [vmem:[%s1406] sm:$0x1]
  %v1408 = vsel %vm61, %v1402, 0.0
  %1409 = vadd.xlane.f32.xlu0 %v1408
  %v1410 = vpop.xlane.xlu0 %1409
  %v1411 = vsel %vm61, %v1403, 0.0
  %1412 = vadd.xlane.f32.xlu0 %v1411
  %v1413 = vpop.xlane.xlu0 %1412
  %v1414 = vmul.f32 %v1410, %v569
  %v1415 = vmul.f32 %v1413, %v569
  %v1416 = vsub.f32 %v1402, %v1414
  %v1417 = vsub.f32 %v1403, %v1415
  %v1418 = vmul.f32 %v1416, %v1416
  %v1419 = vmul.f32 %v1417, %v1417
  %v1420 = vsel %vm61, %v1418, 0.0
  %1421 = vadd.xlane.f32.xlu0 %v1420
  %v1422 = vpop.xlane.xlu0 %1421
  %v1423 = vsel %vm61, %v1419, 0.0
  %1424 = vadd.xlane.f32.xlu0 %v1423
  %v1425 = vpop.xlane.xlu0 %1424
  %v1426 = vmul.f32 %v1422, %v569
  %v1427 = vmul.f32 %v1425, %v569
  %v1428 = vadd.f32 %v1426, 1e-05
  %v1429 = vadd.f32 %v1427, 1e-05
  %v1430 = vrsqrt.pop %v1428
  %v1431 = vmul.f32 %v1430, %v1428
  %v1432 = vmul.f32 %v1431, %v1430
  %v1433 = vmul.f32 0.5, %v1432
  %v1434 = vsub.f32 1.5, %v1433
  %v1435 = vmul.f32 %v1430, %v1434
  %vm1436 = vweird.f32 %v1428
  %vm1437 = vweird.f32 %v1430
  %vm1438 = vmor %vm1436, %vm1437
  %v1439 = vsel %vm1438, %v1430, %v1435
  %v1440 = vrsqrt.pop %v1429
  %v1441 = vmul.f32 %v1440, %v1429
  %v1442 = vmul.f32 %v1441, %v1440
  %v1443 = vmul.f32 0.5, %v1442
  %v1444 = vsub.f32 1.5, %v1443
  %v1445 = vmul.f32 %v1440, %v1444
  %vm1446 = vweird.f32 %v1429
  %vm1447 = vweird.f32 %v1440
  %vm1448 = vmor %vm1446, %vm1447
  %v1449 = vsel %vm1448, %v1440, %v1445
  %v1450 = vmul.f32 %v1416, %v1439
  %v1451 = vmul.f32 %v1417, %v1449
  %v1453 = vperm.slane %v1405, 0
  %v1455 = vmul.f32 %v1450, %v1453
  %v1456 = vmul.f32 %v1451, %v1453
  %v1458 = vperm.slane %v1407, 0
  %v1460 = vadd.f32 %v1455, %v1458
  %v1461 = vadd.f32 %v1456, %v1458
  %1462 = vst.msk [vmem:[%s14] sm:$0xff] %vm61, %v1460
  %1463 = vst.msk [vmem:[%s14 + $0x8] sm:$0xff] %vm61, %v1461
  // Predicated region
  $region58: #{base_transformer_forward.1} parent=0 // pred_check
    _
  $region59: #{base_transformer_forward.1} parent=0 // pred_check_branch
    %1465 = sbr.rel (0) target = $region61
  $region60: #{base_transformer_forward.1} parent=0 // pred_region
    _
  $region61: #{base_transformer_forward.1} parent=0 // pred_fallthru
    _
  // Predicated region
  $region62: #{base_transformer_forward.1} parent=0 // pred_check
    _
  $region63: #{base_transformer_forward.1} parent=0 // pred_check_branch
    %1467 = sbr.rel (0) target = $region65
  $region64: #{base_transformer_forward.1} parent=0 // pred_region
    _
  $region65: #{base_transformer_forward.1} parent=0 // pred_fallthru
    _
  // Predicated region
  $region66: #{base_transformer_forward.1} parent=0 // pred_check
    _
  $region67: #{base_transformer_forward.1} parent=0 // pred_check_branch
    %1469 = sbr.rel (0) target = $region69
  $region68: #{base_transformer_forward.1} parent=0 // pred_region
    _
  $region69: #{base_transformer_forward.1} parent=0 // pred_fallthru
    _
  // Predicated region
  $region70: #{base_transformer_forward.1} parent=0 // pred_check
    _
  $region71: #{base_transformer_forward.1} parent=0 // pred_check_branch
    %1471 = sbr.rel (0) target = $region73
  $region72: #{base_transformer_forward.1} parent=0 // pred_region
    _
  $region73: #{base_transformer_forward.1} parent=0 // pred_fallthru
    _

</llo_original>
